<compile_context>
chip_gen: v5e
topology: v5e:2x2
jax: 0.10.0
libtpu: 0.0.40
codegen_flags: <defaults>
</compile_context>

<pallas_src>
import math
import functools

import jax
import jax.numpy as jnp
from jax.experimental import pallas as pl
from jax.experimental.pallas import tpu as pltpu


# ---------------------------------------------------------------------------
# In-kernel helpers
# ---------------------------------------------------------------------------
def _layernorm(x, g, b, eps):
    """Row-wise layernorm on an f32 value; g/b are (1, E) and broadcast."""
    mean = jnp.mean(x, axis=-1, keepdims=True)
    var = jnp.mean(jnp.square(x - mean), axis=-1, keepdims=True)
    return (x - mean) * jax.lax.rsqrt(var + eps) * g + b


def _round_up(x, m):
    return ((x + m - 1) // m) * m


# ---------------------------------------------------------------------------
# Fused kernel: grid=(B, L).  One step == one TransformerEncoderLayer for one batch element.
# The carry output block (S, E) bf16 is revisited across the layer axis -> VMEM-resident.
# The decoder projection runs on the last layer step and writes the (S, V_pad) logits block.
# ---------------------------------------------------------------------------
def _encoder_stack_kernel(
    x_in_ref, srcmask_ref, pad_ref,
    wqkv_ref, bqkv_ref, wo_ref, bo_ref,
    w1_ref, b1_ref, w2_ref, b2_ref,
    g1_ref, be1_ref, g2_ref, be2_ref,
    wdec_ref, bdec_ref,
    carry_ref, logits_ref,
    *, H, eps,
):
    l = pl.program_id(1)

    @pl.when(l == 0)
    def _init():
        carry_ref[...] = x_in_ref[...]                    # bf16 -> bf16

    x_bf = carry_ref[...]                                 # (S, E) bf16 running activation
    x = x_bf.astype(jnp.float32)                          # f32 for residual / LN math
    E = x.shape[-1]
    HD = E // H

    # ---- fused QKV projection (1/sqrt(HD) scale pre-folded into the Q columns of wqkv) ----
    qkv = jnp.dot(x_bf, wqkv_ref[...],
                  preferred_element_type=jnp.float32) + bqkv_ref[...]     # (S, 3E) f32

    # ---- additive attention mask, built once per (batch, layer) step ----
    neg = jnp.float32(-1e9)                               # finite -> no NaN on fully-masked rows
    add_mask = srcmask_ref[...] + jnp.where(pad_ref[...] > 0.5, neg, jnp.float32(0.0))  # (S, S)

    wo = wo_ref[...]                                      # (E, E) bf16

    # ---- per-head attention with out_proj folded into the head loop ----
    proj = None
    for h in range(H):                                    # static loop (H small)
        q = qkv[:, h * HD:(h + 1) * HD]                   # (S, HD) f32, already scaled
        k = qkv[:, E + h * HD:E + (h + 1) * HD]
        v = qkv[:, 2 * E + h * HD:2 * E + (h + 1) * HD]
        s = jnp.dot(q, k.T, preferred_element_type=jnp.float32) + add_mask
        s = s - jnp.max(s, axis=-1, keepdims=True)
        p = jnp.exp(s)
        p = p * pl.reciprocal(jnp.sum(p, axis=-1, keepdims=True), approx=True)
        attn_h = jnp.dot(p, v, preferred_element_type=jnp.float32)        # (S, HD)
        # concat_h(attn_h) @ Wo == sum_h attn_h @ Wo[h*HD:(h+1)*HD, :]
        term = jnp.dot(attn_h.astype(jnp.bfloat16), wo[h * HD:(h + 1) * HD, :],
                       preferred_element_type=jnp.float32)
        proj = term if proj is None else proj + term
    attn_out = proj + bo_ref[...]                         # (S, E) f32

    # ---- residual + norm1 (fused) ----
    h1 = _layernorm(x + attn_out, g1_ref[...], be1_ref[...], eps)

    # ---- FFN (linear1 + ReLU + linear2) + residual + norm2 (fused) ----
    f = jnp.dot(h1.astype(jnp.bfloat16), w1_ref[...],
                preferred_element_type=jnp.float32) + b1_ref[...]
    f = jnp.maximum(f, 0.0)
    f2 = jnp.dot(f.astype(jnp.bfloat16), w2_ref[...],
                 preferred_element_type=jnp.float32) + b2_ref[...]
    h2 = _layernorm(h1 + f2, g2_ref[...], be2_ref[...], eps)

    carry_ref[...] = h2.astype(carry_ref.dtype)           # bf16 carry

    # ---- decoder Linear fused into the final layer step (lane-dense V_pad output) ----
    @pl.when(l == pl.num_programs(1) - 1)
    def _decode():
        logits = jnp.dot(h2.astype(jnp.bfloat16), wdec_ref[...],
                         preferred_element_type=jnp.float32) + bdec_ref[...]
        logits_ref[...] = logits.astype(logits_ref.dtype)


def _encoder_vmem_bytes(S, E, F, Vp):
    """Rough per-step resident-set estimate used to set vmem_limit_bytes."""
    f32, bf16 = 4, 2
    acts = S * (4 * E + 3 * E + F + Vp) * f32                       # x/h1/h2/attn, qkv, ffn, logits
    per_layer_w = (E * 3 * E + E * E + E * F + F * E) * bf16 \
        + (3 * E + 2 * E + F + 4 * E) * f32
    dec = E * Vp * bf16 + Vp * f32
    io = 2 * (2 * S * E * bf16 + S * Vp * f32) + S * S * f32 + S * f32
    return 2 * per_layer_w + dec + acts + io


def encoder_and_decode(x_bse, src_mask, pad_f, layers, dec_w, dec_b, nhead, eps=1e-5):
    """Run all encoder layers + decoder Linear in one pallas_call.

    x_bse: (B, S, E) bf16, src_mask: (S, S) f32 (finite), pad_f: (B, 1, S) f32.
    Returns logits (B, S, V_pad) f32.
    """
    B, S, E = x_bse.shape
    L = layers["wqkv"].shape[0]
    F = layers["w1"].shape[-1]
    Vp = dec_w.shape[-1]

    vmem_limit = min(64 * 1024 * 1024,
                     max(16 * 1024 * 1024, 2 * _encoder_vmem_bytes(S, E, F, Vp)))

    kern = functools.partial(_encoder_stack_kernel, H=nhead, eps=eps)
    _, logits = pl.pallas_call(
        kern,
        out_shape=(jax.ShapeDtypeStruct((B, S, E), jnp.bfloat16),
                   jax.ShapeDtypeStruct((B, S, Vp), jnp.float32)),
        grid=(B, L),
        in_specs=[
            pl.BlockSpec((None, S, E), lambda b, l: (b, 0, 0)),      # x_in (bf16, read at l==0)
            pl.BlockSpec((S, S), lambda b, l: (0, 0)),               # additive src_mask (f32)
            pl.BlockSpec((None, 1, S), lambda b, l: (b, 0, 0)),      # key padding mask (f32)
            pl.BlockSpec((None, E, 3 * E), lambda b, l: (l, 0, 0)),  # wqkv (bf16, scale folded)
            pl.BlockSpec((None, 1, 3 * E), lambda b, l: (l, 0, 0)),  # bqkv
            pl.BlockSpec((None, E, E), lambda b, l: (l, 0, 0)),      # wo
            pl.BlockSpec((None, 1, E), lambda b, l: (l, 0, 0)),      # bo
            pl.BlockSpec((None, E, F), lambda b, l: (l, 0, 0)),      # w1
            pl.BlockSpec((None, 1, F), lambda b, l: (l, 0, 0)),      # b1
            pl.BlockSpec((None, F, E), lambda b, l: (l, 0, 0)),      # w2
            pl.BlockSpec((None, 1, E), lambda b, l: (l, 0, 0)),      # b2
            pl.BlockSpec((None, 1, E), lambda b, l: (l, 0, 0)),      # norm1 gamma
            pl.BlockSpec((None, 1, E), lambda b, l: (l, 0, 0)),      # norm1 beta
            pl.BlockSpec((None, 1, E), lambda b, l: (l, 0, 0)),      # norm2 gamma
            pl.BlockSpec((None, 1, E), lambda b, l: (l, 0, 0)),      # norm2 beta
            pl.BlockSpec((E, Vp), lambda b, l: (0, 0)),              # decoder weight (bf16)
            pl.BlockSpec((1, Vp), lambda b, l: (0, 0)),              # decoder bias
        ],
        out_specs=(pl.BlockSpec((None, S, E), lambda b, l: (b, 0, 0)),    # VMEM-resident carry
                   pl.BlockSpec((None, S, Vp), lambda b, l: (b, 0, 0))),  # logits (written l==L-1)
        input_output_aliases={0: 0},                                 # donate input slab to carry
        compiler_params=pltpu.CompilerParams(
            dimension_semantics=("parallel", "arbitrary"),
            vmem_limit_bytes=int(vmem_limit)),
    )(x_bse, src_mask, pad_f,
      layers["wqkv"], layers["bqkv"], layers["wo"], layers["bo"],
      layers["w1"], layers["b1"], layers["w2"], layers["b2"],
      layers["norm1_g"], layers["norm1_b"], layers["norm2_g"], layers["norm2_b"],
      dec_w, dec_b)
    return logits


# ---------------------------------------------------------------------------
# Parameters (weights pre-transposed to (in, out), stacked over layers, matmul weights bf16;
# attention scale folded into Q columns; decoder weight lane-padded to a multiple of 128)
# ---------------------------------------------------------------------------
def init_params(key, vocab, d_model, nhead, dim_ff, num_layers, max_len=64):
    E, F, L = d_model, dim_ff, num_layers
    Vp = _round_up(vocab, 128)
    keys = jax.random.split(key, 6)
    initrange = 0.1

    dec_w = jax.random.uniform(keys[1], (E, vocab), jnp.float32, -initrange, initrange)
    dec_w = jnp.pad(dec_w, ((0, 0), (0, Vp - vocab)))               # lane-dense decoder output

    params = {
        # matches init_weights(): uniform(-0.1, 0.1) embedding / decoder weight, zero decoder bias
        "emb": jax.random.uniform(keys[0], (vocab, E), jnp.float32, -initrange, initrange),
        "dec_w": dec_w.astype(jnp.bfloat16),                        # (E, V_pad) bf16
        "dec_b": jnp.zeros((1, Vp), jnp.float32),
    }

    # PositionalEncoding buffer pe: (max_len, 1, d_model)
    position = jnp.arange(max_len, dtype=jnp.float32)[:, None]
    div_term = jnp.exp(jnp.arange(0, E, 2, dtype=jnp.float32) * (-math.log(10000.0) / E))
    pe = jnp.zeros((max_len, 1, E), jnp.float32)
    pe = pe.at[:, 0, 0::2].set(jnp.sin(position * div_term))
    pe = pe.at[:, 0, 1::2].set(jnp.cos(position * div_term))
    params["pe"] = pe

    a = 1.0 / math.sqrt(E)
    af = 1.0 / math.sqrt(F)
    scale = 1.0 / math.sqrt(E // nhead)
    lk = jax.random.split(keys[2], 4)

    wqkv = jax.random.uniform(lk[0], (L, E, 3 * E), jnp.float32, -a, a)
    wqkv = wqkv.at[:, :, :E].multiply(scale)            # fold 1/sqrt(HD) into the Q projection
    bqkv = jnp.zeros((L, 1, 3 * E), jnp.float32)        # zero at init; q-part scaling is a no-op

    params["layers"] = {
        "wqkv": wqkv.astype(jnp.bfloat16),
        "bqkv": bqkv,
        "wo":   jax.random.uniform(lk[1], (L, E, E), jnp.float32, -a, a).astype(jnp.bfloat16),
        "bo":   jnp.zeros((L, 1, E), jnp.float32),
        "w1":   jax.random.uniform(lk[2], (L, E, F), jnp.float32, -a, a).astype(jnp.bfloat16),
        "b1":   jnp.zeros((L, 1, F), jnp.float32),
        "w2":   jax.random.uniform(lk[3], (L, F, E), jnp.float32, -af, af).astype(jnp.bfloat16),
        "b2":   jnp.zeros((L, 1, E), jnp.float32),
        "norm1_g": jnp.ones((L, 1, E), jnp.float32),
        "norm1_b": jnp.zeros((L, 1, E), jnp.float32),
        "norm2_g": jnp.ones((L, 1, E), jnp.float32),
        "norm2_b": jnp.zeros((L, 1, E), jnp.float32),
    }
    return params


# ---------------------------------------------------------------------------
# Forward pass (embedding gather + PE in JAX glue; everything else in the fused Pallas kernel)
# ---------------------------------------------------------------------------
def sep_transformer_forward(params, src, src_mask, padding_mask, *, d_model, nhead):
    """src: (S, B) int32 token ids; src_mask: (S, S) additive float; padding_mask: (B, S) bool."""
    S, B = src.shape
    V = params["emb"].shape[0]

    x = params["emb"][src] * math.sqrt(d_model)         # (S, B, E) token embedding gather
    x = x + params["pe"][:S]                            # dropout = identity (eval)
    x = jnp.transpose(x, (1, 0, 2)).astype(jnp.bfloat16)  # (B, S, E) bf16 slab for the kernel

    pad_f = padding_mask.astype(jnp.float32).reshape(B, 1, S)        # 1.0 = padded key
    src_m = jnp.maximum(src_mask.astype(jnp.float32), jnp.float32(-1e9))  # clamp -inf -> finite

    logits = encoder_and_decode(x, src_m, pad_f, params["layers"],
                                params["dec_w"], params["dec_b"], nhead)  # (B, S, V_pad)
    logits = logits[..., :V]                            # drop lane padding
    return jnp.transpose(logits, (1, 0, 2))             # (S, B, vocab)


# ---------------------------------------------------------------------------
if __name__ == "__main__":
    SRC_VOCAB = 50
    D_MODEL = 32
    NHEAD = 4
    DIM_FF = 64
    NUM_LAYERS = 2
    S, B = 8, 2

    key = jax.random.PRNGKey(0)
    pkey, skey = jax.random.split(key)
    params = init_params(pkey, SRC_VOCAB, D_MODEL, NHEAD, DIM_FF, NUM_LAYERS)

    src = jax.random.randint(skey, (S, B), 0, SRC_VOCAB, dtype=jnp.int32)
    src_mask = jnp.zeros((S, S), jnp.float32)            # additive float attention mask
    padding_mask = jnp.zeros((B, S), dtype=bool)         # True = padded key position
    padding_mask = padding_mask.at[:, -1].set(True)      # mask the last key position

    fwd = jax.jit(sep_transformer_forward, static_argnames=("d_model", "nhead"))
    out = fwd(params, src, src_mask, padding_mask, d_model=D_MODEL, nhead=NHEAD)
    out = jax.block_until_ready(out)

    assert out.shape == (S, B, SRC_VOCAB), out.shape
    assert bool(jnp.all(jnp.isfinite(out)))
    print("KERNEL_OK")
</pallas_src>

<mosaic_0001>
module attributes {stable_mosaic.version = 11 : i64} {
  func.func @_encoder_stack_kernel(%arg0: i32, %arg1: i32, %arg2: memref<1x8x32xbf16, #tpu.memory_space<vmem>>, %arg3: memref<8x8xf32, #tpu.memory_space<vmem>>, %arg4: memref<1x1x8xf32, #tpu.memory_space<vmem>>, %arg5: memref<1x32x96xbf16, #tpu.memory_space<vmem>>, %arg6: memref<1x1x96xf32, #tpu.memory_space<vmem>>, %arg7: memref<1x32x32xbf16, #tpu.memory_space<vmem>>, %arg8: memref<1x1x32xf32, #tpu.memory_space<vmem>>, %arg9: memref<1x32x64xbf16, #tpu.memory_space<vmem>>, %arg10: memref<1x1x64xf32, #tpu.memory_space<vmem>>, %arg11: memref<1x64x32xbf16, #tpu.memory_space<vmem>>, %arg12: memref<1x1x32xf32, #tpu.memory_space<vmem>>, %arg13: memref<1x1x32xf32, #tpu.memory_space<vmem>>, %arg14: memref<1x1x32xf32, #tpu.memory_space<vmem>>, %arg15: memref<1x1x32xf32, #tpu.memory_space<vmem>>, %arg16: memref<1x1x32xf32, #tpu.memory_space<vmem>>, %arg17: memref<32x128xbf16, #tpu.memory_space<vmem>>, %arg18: memref<1x128xf32, #tpu.memory_space<vmem>>, %arg19: memref<1x8x32xbf16, #tpu.memory_space<vmem>>, %arg20: memref<1x8x128xf32, #tpu.memory_space<vmem>>) attributes {dimension_semantics = [#tpu.dimension_semantics<parallel>, #tpu.dimension_semantics<arbitrary>], iteration_bounds = array<i64: 2, 2>, scalar_prefetch = 0 : i64, scratch_operands = 0 : i64, tpu.core_type = #tpu.core_type<tc>, window_params = [{transform_indices = @transform_0, window_bounds = array<i64: 1, 8, 32>}, {pipeline_mode = #tpu.pipeline_mode<synchronous>, transform_indices = @transform_1, window_bounds = array<i64: 8, 8>}, {transform_indices = @transform_2, window_bounds = array<i64: 1, 1, 8>}, {transform_indices = @transform_3, window_bounds = array<i64: 1, 32, 96>}, {transform_indices = @transform_4, window_bounds = array<i64: 1, 1, 96>}, {transform_indices = @transform_5, window_bounds = array<i64: 1, 32, 32>}, {transform_indices = @transform_6, window_bounds = array<i64: 1, 1, 32>}, {transform_indices = @transform_7, window_bounds = array<i64: 1, 32, 64>}, {transform_indices = @transform_8, window_bounds = array<i64: 1, 1, 64>}, {transform_indices = @transform_9, window_bounds = array<i64: 1, 64, 32>}, {transform_indices = @transform_10, window_bounds = array<i64: 1, 1, 32>}, {transform_indices = @transform_11, window_bounds = array<i64: 1, 1, 32>}, {transform_indices = @transform_12, window_bounds = array<i64: 1, 1, 32>}, {transform_indices = @transform_13, window_bounds = array<i64: 1, 1, 32>}, {transform_indices = @transform_14, window_bounds = array<i64: 1, 1, 32>}, {pipeline_mode = #tpu.pipeline_mode<synchronous>, transform_indices = @transform_15, window_bounds = array<i64: 32, 128>}, {pipeline_mode = #tpu.pipeline_mode<synchronous>, transform_indices = @transform_16, window_bounds = array<i64: 1, 128>}, {transform_indices = @transform_17, window_bounds = array<i64: 1, 8, 32>}, {transform_indices = @transform_18, window_bounds = array<i64: 1, 8, 128>}]} {
    %c0_i32 = arith.constant 0 : i32
    %0 = arith.cmpi eq, %arg1, %c0_i32 : i32
    %1 = arith.extui %0 : i1 to i32
    %c0_i32_0 = arith.constant 0 : i32
    %2 = arith.cmpi ne, %1, %c0_i32_0 : i32
    scf.if %2 {
      %c0_84 = arith.constant 0 : index
      %c0_85 = arith.constant 0 : index
      %c0_86 = arith.constant 0 : index
      %191 = vector.load %arg2[%c0_84, %c0_85, %c0_86] : memref<1x8x32xbf16, #tpu.memory_space<vmem>>, vector<1x8x32xbf16>
      %192 = vector.shape_cast %191 : vector<1x8x32xbf16> to vector<8x32xbf16>
      %c0_87 = arith.constant 0 : index
      %c0_88 = arith.constant 0 : index
      %c0_89 = arith.constant 0 : index
      %193 = vector.load %arg19[%c0_87, %c0_88, %c0_89] : memref<1x8x32xbf16, #tpu.memory_space<vmem>>, vector<1x8x32xbf16>
      %194 = vector.shape_cast %193 : vector<1x8x32xbf16> to vector<8x32xbf16>
      %195 = vector.shape_cast %192 : vector<8x32xbf16> to vector<1x8x32xbf16>
      tpu.vector_store %arg19[%c0_87, %c0_88, %c0_89], %195 {strides = array<i32>} : memref<1x8x32xbf16, #tpu.memory_space<vmem>>, vector<1x8x32xbf16>,
    } else {
    }
    %c0 = arith.constant 0 : index
    %c0_1 = arith.constant 0 : index
    %c0_2 = arith.constant 0 : index
    %3 = vector.load %arg19[%c0, %c0_1, %c0_2] : memref<1x8x32xbf16, #tpu.memory_space<vmem>>, vector<1x8x32xbf16>
    %4 = vector.shape_cast %3 : vector<1x8x32xbf16> to vector<8x32xbf16>
    %5 = arith.extf %4 : vector<8x32xbf16> to vector<8x32xf32>
    %c0_3 = arith.constant 0 : index
    %c0_4 = arith.constant 0 : index
    %c0_5 = arith.constant 0 : index
    %6 = vector.load %arg5[%c0_3, %c0_4, %c0_5] : memref<1x32x96xbf16, #tpu.memory_space<vmem>>, vector<1x32x96xbf16>
    %7 = vector.shape_cast %6 : vector<1x32x96xbf16> to vector<32x96xbf16>
    %cst = arith.constant dense<0.000000e+00> : vector<8x96xf32>
    %8 = tpu.matmul %4, %7, %cst {dimension_numbers = #tpu.dot_dimension_numbers<[1], [0], [0], [1], [0, 0, 1, 1], [], []>} : vector<8x32xbf16>, vector<32x96xbf16>, vector<8x96xf32> -> vector<8x96xf32>
    %c0_6 = arith.constant 0 : index
    %c0_7 = arith.constant 0 : index
    %c0_8 = arith.constant 0 : index
    %9 = vector.load %arg6[%c0_6, %c0_7, %c0_8] : memref<1x1x96xf32, #tpu.memory_space<vmem>>, vector<1x1x96xf32>
    %10 = vector.shape_cast %9 : vector<1x1x96xf32> to vector<1x96xf32>
    %11 = vector.broadcast %10 : vector<1x96xf32> to vector<8x96xf32>
    %12 = arith.addf %8, %11 : vector<8x96xf32>
    %c0_9 = arith.constant 0 : index
    %c0_10 = arith.constant 0 : index
    %13 = vector.load %arg3[%c0_9, %c0_10] : memref<8x8xf32, #tpu.memory_space<vmem>>, vector<8x8xf32>
    %c0_11 = arith.constant 0 : index
    %c0_12 = arith.constant 0 : index
    %c0_13 = arith.constant 0 : index
    %14 = vector.load %arg4[%c0_11, %c0_12, %c0_13] : memref<1x1x8xf32, #tpu.memory_space<vmem>>, vector<1x1x8xf32>
    %15 = vector.shape_cast %14 : vector<1x1x8xf32> to vector<1x8xf32>
    %cst_14 = arith.constant 5.000000e-01 : f32
    %16 = vector.broadcast %cst_14 : f32 to vector<1x8xf32>
    %17 = arith.cmpf ogt, %15, %16 : vector<1x8xf32>
    %cst_15 = arith.constant -1.000000e+09 : f32
    %cst_16 = arith.constant 0.000000e+00 : f32
    %18 = vector.broadcast %cst_15 : f32 to vector<1x8xf32>
    %19 = vector.broadcast %cst_16 : f32 to vector<1x8xf32>
    %20 = arith.select %17, %18, %19 : vector<1x8xi1>, vector<1x8xf32>
    %21 = vector.broadcast %20 : vector<1x8xf32> to vector<8x8xf32>
    %22 = arith.addf %13, %21 : vector<8x8xf32>
    %c0_17 = arith.constant 0 : index
    %c0_18 = arith.constant 0 : index
    %c0_19 = arith.constant 0 : index
    %23 = vector.load %arg7[%c0_17, %c0_18, %c0_19] : memref<1x32x32xbf16, #tpu.memory_space<vmem>>, vector<1x32x32xbf16>
    %24 = vector.shape_cast %23 : vector<1x32x32xbf16> to vector<32x32xbf16>
    %25 = vector.extract_strided_slice %12 {offsets = [0, 0], sizes = [8, 8], strides = [1, 1]} : vector<8x96xf32> to vector<8x8xf32>
    %26 = vector.extract_strided_slice %12 {offsets = [0, 32], sizes = [8, 8], strides = [1, 1]} : vector<8x96xf32> to vector<8x8xf32>
    %27 = vector.extract_strided_slice %12 {offsets = [0, 64], sizes = [8, 8], strides = [1, 1]} : vector<8x96xf32> to vector<8x8xf32>
    %28 = tpu.transpose %26, [1, 0] : vector<8x8xf32> -> vector<8x8xf32>
    %cst_20 = arith.constant dense<0.000000e+00> : vector<8x8xf32>
    %29 = tpu.matmul %25, %28, %cst_20 {dimension_numbers = #tpu.dot_dimension_numbers<[1], [0], [0], [1], [0, 0, 1, 1], [], []>} : vector<8x8xf32>, vector<8x8xf32>, vector<8x8xf32> -> vector<8x8xf32>
    %30 = arith.addf %29, %22 : vector<8x8xf32>
    %cst_21 = arith.constant dense<0xFF800000> : vector<8xf32>
    %31 = vector.multi_reduction <maximumf>, %30, %cst_21 [1] : vector<8x8xf32> to vector<8xf32>
    %32 = vector.shape_cast %31 : vector<8xf32> to vector<8x1xf32>
    %33 = vector.broadcast %32 : vector<8x1xf32> to vector<8x8xf32>
    %34 = arith.subf %30, %33 : vector<8x8xf32>
    %35 = math.exp %34 : vector<8x8xf32>
    %cst_22 = arith.constant dense<0.000000e+00> : vector<8xf32>
    %36 = vector.multi_reduction <add>, %35, %cst_22 [1] : vector<8x8xf32> to vector<8xf32>
    %37 = vector.shape_cast %36 : vector<8xf32> to vector<8x1xf32>
    %38 = tpu.reciprocal %37 {approx = true} : vector<8x1xf32> -> vector<8x1xf32>
    %39 = vector.broadcast %38 : vector<8x1xf32> to vector<8x8xf32>
    %40 = arith.mulf %35, %39 : vector<8x8xf32>
    %cst_23 = arith.constant dense<0.000000e+00> : vector<8x8xf32>
    %41 = tpu.matmul %40, %27, %cst_23 {dimension_numbers = #tpu.dot_dimension_numbers<[1], [0], [0], [1], [0, 0, 1, 1], [], []>} : vector<8x8xf32>, vector<8x8xf32>, vector<8x8xf32> -> vector<8x8xf32>
    %42 = arith.truncf %41 : vector<8x8xf32> to vector<8x8xbf16>
    %43 = vector.extract_strided_slice %24 {offsets = [0, 0], sizes = [8, 32], strides = [1, 1]} : vector<32x32xbf16> to vector<8x32xbf16>
    %cst_24 = arith.constant dense<0.000000e+00> : vector<8x32xf32>
    %44 = tpu.matmul %42, %43, %cst_24 {dimension_numbers = #tpu.dot_dimension_numbers<[1], [0], [0], [1], [0, 0, 1, 1], [], []>} : vector<8x8xbf16>, vector<8x32xbf16>, vector<8x32xf32> -> vector<8x32xf32>
    %45 = vector.extract_strided_slice %12 {offsets = [0, 8], sizes = [8, 8], strides = [1, 1]} : vector<8x96xf32> to vector<8x8xf32>
    %46 = vector.extract_strided_slice %12 {offsets = [0, 40], sizes = [8, 8], strides = [1, 1]} : vector<8x96xf32> to vector<8x8xf32>
    %47 = vector.extract_strided_slice %12 {offsets = [0, 72], sizes = [8, 8], strides = [1, 1]} : vector<8x96xf32> to vector<8x8xf32>
    %48 = tpu.transpose %46, [1, 0] : vector<8x8xf32> -> vector<8x8xf32>
    %cst_25 = arith.constant dense<0.000000e+00> : vector<8x8xf32>
    %49 = tpu.matmul %45, %48, %cst_25 {dimension_numbers = #tpu.dot_dimension_numbers<[1], [0], [0], [1], [0, 0, 1, 1], [], []>} : vector<8x8xf32>, vector<8x8xf32>, vector<8x8xf32> -> vector<8x8xf32>
    %50 = arith.addf %49, %22 : vector<8x8xf32>
    %cst_26 = arith.constant dense<0xFF800000> : vector<8xf32>
    %51 = vector.multi_reduction <maximumf>, %50, %cst_26 [1] : vector<8x8xf32> to vector<8xf32>
    %52 = vector.shape_cast %51 : vector<8xf32> to vector<8x1xf32>
    %53 = vector.broadcast %52 : vector<8x1xf32> to vector<8x8xf32>
    %54 = arith.subf %50, %53 : vector<8x8xf32>
    %55 = math.exp %54 : vector<8x8xf32>
    %cst_27 = arith.constant dense<0.000000e+00> : vector<8xf32>
    %56 = vector.multi_reduction <add>, %55, %cst_27 [1] : vector<8x8xf32> to vector<8xf32>
    %57 = vector.shape_cast %56 : vector<8xf32> to vector<8x1xf32>
    %58 = tpu.reciprocal %57 {approx = true} : vector<8x1xf32> -> vector<8x1xf32>
    %59 = vector.broadcast %58 : vector<8x1xf32> to vector<8x8xf32>
    %60 = arith.mulf %55, %59 : vector<8x8xf32>
    %cst_28 = arith.constant dense<0.000000e+00> : vector<8x8xf32>
    %61 = tpu.matmul %60, %47, %cst_28 {dimension_numbers = #tpu.dot_dimension_numbers<[1], [0], [0], [1], [0, 0, 1, 1], [], []>} : vector<8x8xf32>, vector<8x8xf32>, vector<8x8xf32> -> vector<8x8xf32>
    %62 = arith.truncf %61 : vector<8x8xf32> to vector<8x8xbf16>
    %63 = vector.extract_strided_slice %24 {offsets = [8, 0], sizes = [8, 32], strides = [1, 1]} : vector<32x32xbf16> to vector<8x32xbf16>
    %cst_29 = arith.constant dense<0.000000e+00> : vector<8x32xf32>
    %64 = tpu.matmul %62, %63, %cst_29 {dimension_numbers = #tpu.dot_dimension_numbers<[1], [0], [0], [1], [0, 0, 1, 1], [], []>} : vector<8x8xbf16>, vector<8x32xbf16>, vector<8x32xf32> -> vector<8x32xf32>
    %65 = arith.addf %44, %64 : vector<8x32xf32>
    %66 = vector.extract_strided_slice %12 {offsets = [0, 16], sizes = [8, 8], strides = [1, 1]} : vector<8x96xf32> to vector<8x8xf32>
    %67 = vector.extract_strided_slice %12 {offsets = [0, 48], sizes = [8, 8], strides = [1, 1]} : vector<8x96xf32> to vector<8x8xf32>
    %68 = vector.extract_strided_slice %12 {offsets = [0, 80], sizes = [8, 8], strides = [1, 1]} : vector<8x96xf32> to vector<8x8xf32>
    %69 = tpu.transpose %67, [1, 0] : vector<8x8xf32> -> vector<8x8xf32>
    %cst_30 = arith.constant dense<0.000000e+00> : vector<8x8xf32>
    %70 = tpu.matmul %66, %69, %cst_30 {dimension_numbers = #tpu.dot_dimension_numbers<[1], [0], [0], [1], [0, 0, 1, 1], [], []>} : vector<8x8xf32>, vector<8x8xf32>, vector<8x8xf32> -> vector<8x8xf32>
    %71 = arith.addf %70, %22 : vector<8x8xf32>
    %cst_31 = arith.constant dense<0xFF800000> : vector<8xf32>
    %72 = vector.multi_reduction <maximumf>, %71, %cst_31 [1] : vector<8x8xf32> to vector<8xf32>
    %73 = vector.shape_cast %72 : vector<8xf32> to vector<8x1xf32>
    %74 = vector.broadcast %73 : vector<8x1xf32> to vector<8x8xf32>
    %75 = arith.subf %71, %74 : vector<8x8xf32>
    %76 = math.exp %75 : vector<8x8xf32>
    %cst_32 = arith.constant dense<0.000000e+00> : vector<8xf32>
    %77 = vector.multi_reduction <add>, %76, %cst_32 [1] : vector<8x8xf32> to vector<8xf32>
    %78 = vector.shape_cast %77 : vector<8xf32> to vector<8x1xf32>
    %79 = tpu.reciprocal %78 {approx = true} : vector<8x1xf32> -> vector<8x1xf32>
    %80 = vector.broadcast %79 : vector<8x1xf32> to vector<8x8xf32>
    %81 = arith.mulf %76, %80 : vector<8x8xf32>
    %cst_33 = arith.constant dense<0.000000e+00> : vector<8x8xf32>
    %82 = tpu.matmul %81, %68, %cst_33 {dimension_numbers = #tpu.dot_dimension_numbers<[1], [0], [0], [1], [0, 0, 1, 1], [], []>} : vector<8x8xf32>, vector<8x8xf32>, vector<8x8xf32> -> vector<8x8xf32>
    %83 = arith.truncf %82 : vector<8x8xf32> to vector<8x8xbf16>
    %84 = vector.extract_strided_slice %24 {offsets = [16, 0], sizes = [8, 32], strides = [1, 1]} : vector<32x32xbf16> to vector<8x32xbf16>
    %cst_34 = arith.constant dense<0.000000e+00> : vector<8x32xf32>
    %85 = tpu.matmul %83, %84, %cst_34 {dimension_numbers = #tpu.dot_dimension_numbers<[1], [0], [0], [1], [0, 0, 1, 1], [], []>} : vector<8x8xbf16>, vector<8x32xbf16>, vector<8x32xf32> -> vector<8x32xf32>
    %86 = arith.addf %65, %85 : vector<8x32xf32>
    %87 = vector.extract_strided_slice %12 {offsets = [0, 24], sizes = [8, 8], strides = [1, 1]} : vector<8x96xf32> to vector<8x8xf32>
    %88 = vector.extract_strided_slice %12 {offsets = [0, 56], sizes = [8, 8], strides = [1, 1]} : vector<8x96xf32> to vector<8x8xf32>
    %89 = vector.extract_strided_slice %12 {offsets = [0, 88], sizes = [8, 8], strides = [1, 1]} : vector<8x96xf32> to vector<8x8xf32>
    %90 = tpu.transpose %88, [1, 0] : vector<8x8xf32> -> vector<8x8xf32>
    %cst_35 = arith.constant dense<0.000000e+00> : vector<8x8xf32>
    %91 = tpu.matmul %87, %90, %cst_35 {dimension_numbers = #tpu.dot_dimension_numbers<[1], [0], [0], [1], [0, 0, 1, 1], [], []>} : vector<8x8xf32>, vector<8x8xf32>, vector<8x8xf32> -> vector<8x8xf32>
    %92 = arith.addf %91, %22 : vector<8x8xf32>
    %cst_36 = arith.constant dense<0xFF800000> : vector<8xf32>
    %93 = vector.multi_reduction <maximumf>, %92, %cst_36 [1] : vector<8x8xf32> to vector<8xf32>
    %94 = vector.shape_cast %93 : vector<8xf32> to vector<8x1xf32>
    %95 = vector.broadcast %94 : vector<8x1xf32> to vector<8x8xf32>
    %96 = arith.subf %92, %95 : vector<8x8xf32>
    %97 = math.exp %96 : vector<8x8xf32>
    %cst_37 = arith.constant dense<0.000000e+00> : vector<8xf32>
    %98 = vector.multi_reduction <add>, %97, %cst_37 [1] : vector<8x8xf32> to vector<8xf32>
    %99 = vector.shape_cast %98 : vector<8xf32> to vector<8x1xf32>
    %100 = tpu.reciprocal %99 {approx = true} : vector<8x1xf32> -> vector<8x1xf32>
    %101 = vector.broadcast %100 : vector<8x1xf32> to vector<8x8xf32>
    %102 = arith.mulf %97, %101 : vector<8x8xf32>
    %cst_38 = arith.constant dense<0.000000e+00> : vector<8x8xf32>
    %103 = tpu.matmul %102, %89, %cst_38 {dimension_numbers = #tpu.dot_dimension_numbers<[1], [0], [0], [1], [0, 0, 1, 1], [], []>} : vector<8x8xf32>, vector<8x8xf32>, vector<8x8xf32> -> vector<8x8xf32>
    %104 = arith.truncf %103 : vector<8x8xf32> to vector<8x8xbf16>
    %105 = vector.extract_strided_slice %24 {offsets = [24, 0], sizes = [8, 32], strides = [1, 1]} : vector<32x32xbf16> to vector<8x32xbf16>
    %cst_39 = arith.constant dense<0.000000e+00> : vector<8x32xf32>
    %106 = tpu.matmul %104, %105, %cst_39 {dimension_numbers = #tpu.dot_dimension_numbers<[1], [0], [0], [1], [0, 0, 1, 1], [], []>} : vector<8x8xbf16>, vector<8x32xbf16>, vector<8x32xf32> -> vector<8x32xf32>
    %107 = arith.addf %86, %106 : vector<8x32xf32>
    %c0_40 = arith.constant 0 : index
    %c0_41 = arith.constant 0 : index
    %c0_42 = arith.constant 0 : index
    %108 = vector.load %arg8[%c0_40, %c0_41, %c0_42] : memref<1x1x32xf32, #tpu.memory_space<vmem>>, vector<1x1x32xf32>
    %109 = vector.shape_cast %108 : vector<1x1x32xf32> to vector<1x32xf32>
    %110 = vector.broadcast %109 : vector<1x32xf32> to vector<8x32xf32>
    %111 = arith.addf %107, %110 : vector<8x32xf32>
    %112 = arith.addf %5, %111 : vector<8x32xf32>
    %c0_43 = arith.constant 0 : index
    %c0_44 = arith.constant 0 : index
    %c0_45 = arith.constant 0 : index
    %113 = vector.load %arg13[%c0_43, %c0_44, %c0_45] : memref<1x1x32xf32, #tpu.memory_space<vmem>>, vector<1x1x32xf32>
    %114 = vector.shape_cast %113 : vector<1x1x32xf32> to vector<1x32xf32>
    %c0_46 = arith.constant 0 : index
    %c0_47 = arith.constant 0 : index
    %c0_48 = arith.constant 0 : index
    %115 = vector.load %arg14[%c0_46, %c0_47, %c0_48] : memref<1x1x32xf32, #tpu.memory_space<vmem>>, vector<1x1x32xf32>
    %116 = vector.shape_cast %115 : vector<1x1x32xf32> to vector<1x32xf32>
    %cst_49 = arith.constant dense<0.000000e+00> : vector<8xf32>
    %117 = vector.multi_reduction <add>, %112, %cst_49 [1] : vector<8x32xf32> to vector<8xf32>
    %118 = vector.shape_cast %117 : vector<8xf32> to vector<8x1xf32>
    %cst_50 = arith.constant 3.200000e+01 : f32
    %119 = vector.broadcast %cst_50 : f32 to vector<8x1xf32>
    %120 = arith.divf %118, %119 : vector<8x1xf32>
    %121 = vector.broadcast %120 : vector<8x1xf32> to vector<8x32xf32>
    %122 = arith.subf %112, %121 : vector<8x32xf32>
    %123 = arith.mulf %122, %122 : vector<8x32xf32>
    %cst_51 = arith.constant dense<0.000000e+00> : vector<8xf32>
    %124 = vector.multi_reduction <add>, %123, %cst_51 [1] : vector<8x32xf32> to vector<8xf32>
    %125 = vector.shape_cast %124 : vector<8xf32> to vector<8x1xf32>
    %cst_52 = arith.constant 3.200000e+01 : f32
    %126 = vector.broadcast %cst_52 : f32 to vector<8x1xf32>
    %127 = arith.divf %125, %126 : vector<8x1xf32>
    %128 = vector.broadcast %120 : vector<8x1xf32> to vector<8x32xf32>
    %129 = arith.subf %112, %128 : vector<8x32xf32>
    %cst_53 = arith.constant 9.99999974E-6 : f32
    %130 = vector.broadcast %cst_53 : f32 to vector<8x1xf32>
    %131 = arith.addf %127, %130 : vector<8x1xf32>
    %132 = math.rsqrt %131 : vector<8x1xf32>
    %133 = vector.broadcast %132 : vector<8x1xf32> to vector<8x32xf32>
    %134 = arith.mulf %129, %133 : vector<8x32xf32>
    %135 = vector.broadcast %114 : vector<1x32xf32> to vector<8x32xf32>
    %136 = arith.mulf %134, %135 : vector<8x32xf32>
    %137 = vector.broadcast %116 : vector<1x32xf32> to vector<8x32xf32>
    %138 = arith.addf %136, %137 : vector<8x32xf32>
    %139 = arith.truncf %138 : vector<8x32xf32> to vector<8x32xbf16>
    %c0_54 = arith.constant 0 : index
    %c0_55 = arith.constant 0 : index
    %c0_56 = arith.constant 0 : index
    %140 = vector.load %arg9[%c0_54, %c0_55, %c0_56] : memref<1x32x64xbf16, #tpu.memory_space<vmem>>, vector<1x32x64xbf16>
    %141 = vector.shape_cast %140 : vector<1x32x64xbf16> to vector<32x64xbf16>
    %cst_57 = arith.constant dense<0.000000e+00> : vector<8x64xf32>
    %142 = tpu.matmul %139, %141, %cst_57 {dimension_numbers = #tpu.dot_dimension_numbers<[1], [0], [0], [1], [0, 0, 1, 1], [], []>} : vector<8x32xbf16>, vector<32x64xbf16>, vector<8x64xf32> -> vector<8x64xf32>
    %c0_58 = arith.constant 0 : index
    %c0_59 = arith.constant 0 : index
    %c0_60 = arith.constant 0 : index
    %143 = vector.load %arg10[%c0_58, %c0_59, %c0_60] : memref<1x1x64xf32, #tpu.memory_space<vmem>>, vector<1x1x64xf32>
    %144 = vector.shape_cast %143 : vector<1x1x64xf32> to vector<1x64xf32>
    %145 = vector.broadcast %144 : vector<1x64xf32> to vector<8x64xf32>
    %146 = arith.addf %142, %145 : vector<8x64xf32>
    %cst_61 = arith.constant 0.000000e+00 : f32
    %147 = vector.broadcast %cst_61 : f32 to vector<8x64xf32>
    %148 = arith.maximumf %146, %147 : vector<8x64xf32>
    %149 = arith.truncf %148 : vector<8x64xf32> to vector<8x64xbf16>
    %c0_62 = arith.constant 0 : index
    %c0_63 = arith.constant 0 : index
    %c0_64 = arith.constant 0 : index
    %150 = vector.load %arg11[%c0_62, %c0_63, %c0_64] : memref<1x64x32xbf16, #tpu.memory_space<vmem>>, vector<1x64x32xbf16>
    %151 = vector.shape_cast %150 : vector<1x64x32xbf16> to vector<64x32xbf16>
    %cst_65 = arith.constant dense<0.000000e+00> : vector<8x32xf32>
    %152 = tpu.matmul %149, %151, %cst_65 {dimension_numbers = #tpu.dot_dimension_numbers<[1], [0], [0], [1], [0, 0, 1, 1], [], []>} : vector<8x64xbf16>, vector<64x32xbf16>, vector<8x32xf32> -> vector<8x32xf32>
    %c0_66 = arith.constant 0 : index
    %c0_67 = arith.constant 0 : index
    %c0_68 = arith.constant 0 : index
    %153 = vector.load %arg12[%c0_66, %c0_67, %c0_68] : memref<1x1x32xf32, #tpu.memory_space<vmem>>, vector<1x1x32xf32>
    %154 = vector.shape_cast %153 : vector<1x1x32xf32> to vector<1x32xf32>
    %155 = vector.broadcast %154 : vector<1x32xf32> to vector<8x32xf32>
    %156 = arith.addf %152, %155 : vector<8x32xf32>
    %157 = arith.addf %138, %156 : vector<8x32xf32>
    %c0_69 = arith.constant 0 : index
    %c0_70 = arith.constant 0 : index
    %c0_71 = arith.constant 0 : index
    %158 = vector.load %arg15[%c0_69, %c0_70, %c0_71] : memref<1x1x32xf32, #tpu.memory_space<vmem>>, vector<1x1x32xf32>
    %159 = vector.shape_cast %158 : vector<1x1x32xf32> to vector<1x32xf32>
    %c0_72 = arith.constant 0 : index
    %c0_73 = arith.constant 0 : index
    %c0_74 = arith.constant 0 : index
    %160 = vector.load %arg16[%c0_72, %c0_73, %c0_74] : memref<1x1x32xf32, #tpu.memory_space<vmem>>, vector<1x1x32xf32>
    %161 = vector.shape_cast %160 : vector<1x1x32xf32> to vector<1x32xf32>
    %cst_75 = arith.constant dense<0.000000e+00> : vector<8xf32>
    %162 = vector.multi_reduction <add>, %157, %cst_75 [1] : vector<8x32xf32> to vector<8xf32>
    %163 = vector.shape_cast %162 : vector<8xf32> to vector<8x1xf32>
    %cst_76 = arith.constant 3.200000e+01 : f32
    %164 = vector.broadcast %cst_76 : f32 to vector<8x1xf32>
    %165 = arith.divf %163, %164 : vector<8x1xf32>
    %166 = vector.broadcast %165 : vector<8x1xf32> to vector<8x32xf32>
    %167 = arith.subf %157, %166 : vector<8x32xf32>
    %168 = arith.mulf %167, %167 : vector<8x32xf32>
    %cst_77 = arith.constant dense<0.000000e+00> : vector<8xf32>
    %169 = vector.multi_reduction <add>, %168, %cst_77 [1] : vector<8x32xf32> to vector<8xf32>
    %170 = vector.shape_cast %169 : vector<8xf32> to vector<8x1xf32>
    %cst_78 = arith.constant 3.200000e+01 : f32
    %171 = vector.broadcast %cst_78 : f32 to vector<8x1xf32>
    %172 = arith.divf %170, %171 : vector<8x1xf32>
    %173 = vector.broadcast %165 : vector<8x1xf32> to vector<8x32xf32>
    %174 = arith.subf %157, %173 : vector<8x32xf32>
    %cst_79 = arith.constant 9.99999974E-6 : f32
    %175 = vector.broadcast %cst_79 : f32 to vector<8x1xf32>
    %176 = arith.addf %172, %175 : vector<8x1xf32>
    %177 = math.rsqrt %176 : vector<8x1xf32>
    %178 = vector.broadcast %177 : vector<8x1xf32> to vector<8x32xf32>
    %179 = arith.mulf %174, %178 : vector<8x32xf32>
    %180 = vector.broadcast %159 : vector<1x32xf32> to vector<8x32xf32>
    %181 = arith.mulf %179, %180 : vector<8x32xf32>
    %182 = vector.broadcast %161 : vector<1x32xf32> to vector<8x32xf32>
    %183 = arith.addf %181, %182 : vector<8x32xf32>
    %184 = arith.truncf %183 : vector<8x32xf32> to vector<8x32xbf16>
    %c0_80 = arith.constant 0 : index
    %c0_81 = arith.constant 0 : index
    %c0_82 = arith.constant 0 : index
    %185 = vector.load %arg19[%c0_80, %c0_81, %c0_82] : memref<1x8x32xbf16, #tpu.memory_space<vmem>>, vector<1x8x32xbf16>
    %186 = vector.shape_cast %185 : vector<1x8x32xbf16> to vector<8x32xbf16>
    %187 = vector.shape_cast %184 : vector<8x32xbf16> to vector<1x8x32xbf16>
    tpu.vector_store %arg19[%c0_80, %c0_81, %c0_82], %187 {strides = array<i32>} : memref<1x8x32xbf16, #tpu.memory_space<vmem>>, vector<1x8x32xbf16>,
    %c1_i32 = arith.constant 1 : i32
    %188 = arith.cmpi eq, %arg1, %c1_i32 : i32
    %189 = arith.extui %188 : i1 to i32
    %c0_i32_83 = arith.constant 0 : i32
    %190 = arith.cmpi ne, %189, %c0_i32_83 : i32
    scf.if %190 {
      %191 = arith.truncf %183 : vector<8x32xf32> to vector<8x32xbf16>
      %c0_84 = arith.constant 0 : index
      %c0_85 = arith.constant 0 : index
      %192 = vector.load %arg17[%c0_84, %c0_85] : memref<32x128xbf16, #tpu.memory_space<vmem>>, vector<32x128xbf16>
      %cst_86 = arith.constant dense<0.000000e+00> : vector<8x128xf32>
      %193 = tpu.matmul %191, %192, %cst_86 {dimension_numbers = #tpu.dot_dimension_numbers<[1], [0], [0], [1], [0, 0, 1, 1], [], []>} : vector<8x32xbf16>, vector<32x128xbf16>, vector<8x128xf32> -> vector<8x128xf32>
      %c0_87 = arith.constant 0 : index
      %c0_88 = arith.constant 0 : index
      %194 = vector.load %arg18[%c0_87, %c0_88] : memref<1x128xf32, #tpu.memory_space<vmem>>, vector<1x128xf32>
      %195 = vector.broadcast %194 : vector<1x128xf32> to vector<8x128xf32>
      %196 = arith.addf %193, %195 : vector<8x128xf32>
      %c0_89 = arith.constant 0 : index
      %c0_90 = arith.constant 0 : index
      %c0_91 = arith.constant 0 : index
      %197 = vector.load %arg20[%c0_89, %c0_90, %c0_91] : memref<1x8x128xf32, #tpu.memory_space<vmem>>, vector<1x8x128xf32>
      %198 = vector.shape_cast %197 : vector<1x8x128xf32> to vector<8x128xf32>
      %199 = vector.shape_cast %196 : vector<8x128xf32> to vector<1x8x128xf32>
      tpu.vector_store %arg20[%c0_89, %c0_90, %c0_91], %199 {strides = array<i32>} : memref<1x8x128xf32, #tpu.memory_space<vmem>>, vector<1x8x128xf32>,
    } else {
    }
    return
  }
  func.func @transform_0(%arg0: i32, %arg1: i32) -> (i32, i32, i32) {
    %c0_i32 = arith.constant 0 : i32
    %c0_i32_0 = arith.constant 0 : i32
    %c0_i32_1 = arith.constant 0 : i32
    return %arg0, %c0_i32, %c0_i32_0 : i32, i32, i32
  }
  func.func @transform_1(%arg0: i32, %arg1: i32) -> (i32, i32) {
    %c0_i32 = arith.constant 0 : i32
    %c0_i32_0 = arith.constant 0 : i32
    %c0_i32_1 = arith.constant 0 : i32
    return %c0_i32, %c0_i32_0 : i32, i32
  }
  func.func @transform_2(%arg0: i32, %arg1: i32) -> (i32, i32, i32) {
    %c0_i32 = arith.constant 0 : i32
    %c0_i32_0 = arith.constant 0 : i32
    %c0_i32_1 = arith.constant 0 : i32
    return %arg0, %c0_i32, %c0_i32_0 : i32, i32, i32
  }
  func.func @transform_3(%arg0: i32, %arg1: i32) -> (i32, i32, i32) {
    %c0_i32 = arith.constant 0 : i32
    %c0_i32_0 = arith.constant 0 : i32
    %c0_i32_1 = arith.constant 0 : i32
    return %arg1, %c0_i32, %c0_i32_0 : i32, i32, i32
  }
  func.func @transform_4(%arg0: i32, %arg1: i32) -> (i32, i32, i32) {
    %c0_i32 = arith.constant 0 : i32
    %c0_i32_0 = arith.constant 0 : i32
    %c0_i32_1 = arith.constant 0 : i32
    return %arg1, %c0_i32, %c0_i32_0 : i32, i32, i32
  }
  func.func @transform_5(%arg0: i32, %arg1: i32) -> (i32, i32, i32) {
    %c0_i32 = arith.constant 0 : i32
    %c0_i32_0 = arith.constant 0 : i32
    %c0_i32_1 = arith.constant 0 : i32
    return %arg1, %c0_i32, %c0_i32_0 : i32, i32, i32
  }
  func.func @transform_6(%arg0: i32, %arg1: i32) -> (i32, i32, i32) {
    %c0_i32 = arith.constant 0 : i32
    %c0_i32_0 = arith.constant 0 : i32
    %c0_i32_1 = arith.constant 0 : i32
    return %arg1, %c0_i32, %c0_i32_0 : i32, i32, i32
  }
  func.func @transform_7(%arg0: i32, %arg1: i32) -> (i32, i32, i32) {
    %c0_i32 = arith.constant 0 : i32
    %c0_i32_0 = arith.constant 0 : i32
    %c0_i32_1 = arith.constant 0 : i32
    return %arg1, %c0_i32, %c0_i32_0 : i32, i32, i32
  }
  func.func @transform_8(%arg0: i32, %arg1: i32) -> (i32, i32, i32) {
    %c0_i32 = arith.constant 0 : i32
    %c0_i32_0 = arith.constant 0 : i32
    %c0_i32_1 = arith.constant 0 : i32
    return %arg1, %c0_i32, %c0_i32_0 : i32, i32, i32
  }
  func.func @transform_9(%arg0: i32, %arg1: i32) -> (i32, i32, i32) {
    %c0_i32 = arith.constant 0 : i32
    %c0_i32_0 = arith.constant 0 : i32
    %c0_i32_1 = arith.constant 0 : i32
    return %arg1, %c0_i32, %c0_i32_0 : i32, i32, i32
  }
  func.func @transform_10(%arg0: i32, %arg1: i32) -> (i32, i32, i32) {
    %c0_i32 = arith.constant 0 : i32
    %c0_i32_0 = arith.constant 0 : i32
    %c0_i32_1 = arith.constant 0 : i32
    return %arg1, %c0_i32, %c0_i32_0 : i32, i32, i32
  }
  func.func @transform_11(%arg0: i32, %arg1: i32) -> (i32, i32, i32) {
    %c0_i32 = arith.constant 0 : i32
    %c0_i32_0 = arith.constant 0 : i32
    %c0_i32_1 = arith.constant 0 : i32
    return %arg1, %c0_i32, %c0_i32_0 : i32, i32, i32
  }
  func.func @transform_12(%arg0: i32, %arg1: i32) -> (i32, i32, i32) {
    %c0_i32 = arith.constant 0 : i32
    %c0_i32_0 = arith.constant 0 : i32
    %c0_i32_1 = arith.constant 0 : i32
    return %arg1, %c0_i32, %c0_i32_0 : i32, i32, i32
  }
  func.func @transform_13(%arg0: i32, %arg1: i32) -> (i32, i32, i32) {
    %c0_i32 = arith.constant 0 : i32
    %c0_i32_0 = arith.constant 0 : i32
    %c0_i32_1 = arith.constant 0 : i32
    return %arg1, %c0_i32, %c0_i32_0 : i32, i32, i32
  }
  func.func @transform_14(%arg0: i32, %arg1: i32) -> (i32, i32, i32) {
    %c0_i32 = arith.constant 0 : i32
    %c0_i32_0 = arith.constant 0 : i32
    %c0_i32_1 = arith.constant 0 : i32
    return %arg1, %c0_i32, %c0_i32_0 : i32, i32, i32
  }
  func.func @transform_15(%arg0: i32, %arg1: i32) -> (i32, i32) {
    %c0_i32 = arith.constant 0 : i32
    %c0_i32_0 = arith.constant 0 : i32
    %c0_i32_1 = arith.constant 0 : i32
    return %c0_i32, %c0_i32_0 : i32, i32
  }
  func.func @transform_16(%arg0: i32, %arg1: i32) -> (i32, i32) {
    %c0_i32 = arith.constant 0 : i32
    %c0_i32_0 = arith.constant 0 : i32
    %c0_i32_1 = arith.constant 0 : i32
    return %c0_i32, %c0_i32_0 : i32, i32
  }
  func.func @transform_17(%arg0: i32, %arg1: i32) -> (i32, i32, i32) {
    %c0_i32 = arith.constant 0 : i32
    %c0_i32_0 = arith.constant 0 : i32
    %c0_i32_1 = arith.constant 0 : i32
    return %arg0, %c0_i32, %c0_i32_0 : i32, i32, i32
  }
  func.func @transform_18(%arg0: i32, %arg1: i32) -> (i32, i32, i32) {
    %c0_i32 = arith.constant 0 : i32
    %c0_i32_0 = arith.constant 0 : i32
    %c0_i32_1 = arith.constant 0 : i32
    return %arg0, %c0_i32, %c0_i32_0 : i32, i32, i32
  }
}

</mosaic_0001>

<llo_original>
// kernel: sep_transformer_forward.1
$region0: #{sep_transformer_forward.1}
  #allocation0 [shape = 'u32[]', space=smem, size = 0x4, offset = 0x4, fixed_abs, tag = 'smem constant byte address 0x4 - core index']
  #allocation1 [shape = 'u32[72,128]{1,0:T(1,128)}', space=vmem, size = 0x9000, scoped, tag = 'internal scratch']
  %s0 = inlined_call_operand.vmem [shape: bf16[2,8,32], index: 0, kind: input, shape index: {}, may-alias: {0,17}]
  %s1 = inlined_call_operand.vmem [shape: f32[8,8], index: 1, kind: input, shape index: {}]
  %s2 = inlined_call_operand.vmem [shape: f32[2,1,8], index: 2, kind: input, shape index: {}]
  %s3 = inlined_call_operand.vmem [shape: bf16[2,32,96], index: 3, kind: input, shape index: {}]
  %s4 = inlined_call_operand.vmem [shape: f32[2,1,96], index: 4, kind: input, shape index: {}]
  %s5 = inlined_call_operand.vmem [shape: bf16[2,32,32], index: 5, kind: input, shape index: {}]
  %s6 = inlined_call_operand.vmem [shape: f32[2,1,32], index: 6, kind: input, shape index: {}]
  %s7 = inlined_call_operand.vmem [shape: bf16[2,32,64], index: 7, kind: input, shape index: {}]
  %s8 = inlined_call_operand.vmem [shape: f32[2,1,64], index: 8, kind: input, shape index: {}]
  %s9 = inlined_call_operand.vmem [shape: bf16[2,64,32], index: 9, kind: input, shape index: {}]
  %s10 = inlined_call_operand.vmem [shape: f32[2,1,32], index: 10, kind: input, shape index: {}]
  %s11 = inlined_call_operand.vmem [shape: f32[2,1,32], index: 11, kind: input, shape index: {}]
  %s12 = inlined_call_operand.vmem [shape: f32[2,1,32], index: 12, kind: input, shape index: {}]
  %s13 = inlined_call_operand.vmem [shape: f32[2,1,32], index: 13, kind: input, shape index: {}]
  %s14 = inlined_call_operand.vmem [shape: f32[2,1,32], index: 14, kind: input, shape index: {}]
  %s15 = inlined_call_operand.vmem [shape: bf16[32,128], index: 15, kind: input, shape index: {}]
  %s16 = inlined_call_operand.vmem [shape: f32[1,128], index: 16, kind: input, shape index: {}]
  %s17 = inlined_call_operand.vmem [shape: bf16[2,8,32], index: 17, kind: output, shape index: {0}, may-alias: {0,17}]
  %s18 = inlined_call_operand.vmem [shape: f32[2,8,128], index: 18, kind: output, shape index: {1}]
  %19 = xla_tuple %s17, %s18
  %s20 = sld [smem:[#allocation0]]
  $region117: #{sep_transformer_forward.1} parent=0
    _
  %s22 = ssub.s32 1, %s20
  %s23 = scalar_select 0, %s22, %s20
  loop: start=0, step=1, limit=6
  $region2: #{sep_transformer_forward.1} parent=0 // loop_pre_header
    _
  $region3: #{sep_transformer_forward.1} parent=0 // loop_header
    %s25 = sphi 0, %s29
    %p26 = scmp.ge.s32.totalorder %s25, 6
    %s32 = sphi 0, %s44
    %s33 = sphi 0, %s40
    %s34 = sphi 0, %s32
    %s35 = sphi 0, %s33
    %s36 = sphi 0, %s34
    %s37 = sphi 0, %s35
    %s47 = sphi 0, %s49
    %s50 = sphi 0, %s47
    %s51 = sphi 0, %s50
    %s67 = sphi 0, %s51
    %s71 = sphi 0, %s71
    %s73 = sphi 0, %s71
    %s74 = sphi 0, %s73
    %s88 = sphi 0, %s74
    %s94 = sphi 0, %s96
    %s97 = sphi 0, %s94
    %s98 = sphi 0, %s97
    %s114 = sphi 0, %s98
    %s120 = sphi 0, %s122
    %s123 = sphi 0, %s120
    %s124 = sphi 0, %s123
    %s140 = sphi 0, %s124
    %s146 = sphi 0, %s148
    %s149 = sphi 0, %s146
    %s150 = sphi 0, %s149
    %s166 = sphi 0, %s150
    %s172 = sphi 0, %s174
    %s175 = sphi 0, %s172
    %s176 = sphi 0, %s175
    %s192 = sphi 0, %s176
    %s198 = sphi 0, %s200
    %s201 = sphi 0, %s198
    %s202 = sphi 0, %s201
    %s218 = sphi 0, %s202
    %s224 = sphi 0, %s226
    %s227 = sphi 0, %s224
    %s228 = sphi 0, %s227
    %s244 = sphi 0, %s228
    %s250 = sphi 0, %s252
    %s253 = sphi 0, %s250
    %s254 = sphi 0, %s253
    %s270 = sphi 0, %s254
    %s276 = sphi 0, %s278
    %s279 = sphi 0, %s276
    %s280 = sphi 0, %s279
    %s296 = sphi 0, %s280
    %s302 = sphi 0, %s304
    %s305 = sphi 0, %s302
    %s306 = sphi 0, %s305
    %s322 = sphi 0, %s306
    %s328 = sphi 0, %s330
    %s331 = sphi 0, %s328
    %s332 = sphi 0, %s331
    %s348 = sphi 0, %s332
    %s354 = sphi 0, %s356
    %s357 = sphi 0, %s354
    %s358 = sphi 0, %s357
    %s374 = sphi 0, %s358
    %s380 = sphi 0, %s382
    %s383 = sphi 0, %s380
    %s384 = sphi 0, %s383
    %s400 = sphi 0, %s384
    %s406 = sphi 0, %s408
    %s409 = sphi 0, %s406
    %s410 = sphi 0, %s409
    %s426 = sphi 0, %s410
    %s430 = sphi 0, %s430
    %s432 = sphi 0, %s430
    %s433 = sphi 0, %s432
    %s447 = sphi 0, %s433
    %s451 = sphi 0, %s451
    %s453 = sphi 0, %s451
    %s454 = sphi 0, %s453
    %s468 = sphi 0, %s454
    %s474 = sphi 0, %s476
    %s477 = sphi 0, %s474
    %s478 = sphi 0, %s477
    %s494 = sphi 0, %s478
    %s500 = sphi 0, %s502
    %s503 = sphi 0, %s500
    %s504 = sphi 0, %s503
    %s520 = sphi 0, %s504
  $region4: #{sep_transformer_forward.1} parent=0 // loop_header_branch
    %28 = sbr.rel (%p26) target = $region8
  $region5: #{sep_transformer_forward.1} parent=0 // loop_body
    %s30 = ssub.s32 %s25, 1
    %s31 = ssub.s32 %s25, 2
    %s38 = sadd.s32 1, %s33
    %p39 = scmp.ge.s32.totalorder %s38, 2
    %s40 = scalar_select %p39, 0, %s38
    %s41 = sadd.s32 1, %s32
    %s42 = scalar_select %p39, %s41, %s32
    %p43 = scmp.ge.s32.totalorder %s42, 2
    %s44 = scalar_select %p43, 0, %s42
    %s45 = ssub.s32 %s32, %s44
    %p46 = scmp.eq.s32.totalorder %s45, 0
    %s48 = sadd.s32 %s47, 1
    %s49 = scalar_select %p46, %s47, %s48
    %p52 = pneg %p46
    %p53 = scmp.eq.s32.totalorder %s25, 3
    %p54 = por %p52, %p53
    %p55 = scmp.ne.s32.totalorder %s47, %s50
    %p56 = scmp.eq.s32.totalorder %s25, 0
    %p57 = por %p55, %p56
    %p58 = scmp.ne.s32.totalorder %s47, %s50
    %p59 = scmp.eq.s32.totalorder %s30, 3
    %p60 = por %p58, %p59
    %p61 = scmp.ne.s32.totalorder %s50, %s51
    %p62 = scmp.eq.s32.totalorder %s30, 0
    %p63 = por %p61, %p62
    %p64 = scmp.ne.s32.totalorder %s50, %s51
    %p65 = scmp.eq.s32.totalorder %s31, 3
    %p66 = por %p64, %p65
    %p68 = scmp.ne.s32.totalorder %s51, %s67
    %p69 = scmp.eq.s32.totalorder %s31, 0
    %p70 = por %p68, %p69
    %s72 = sadd.s32 %s71, 1
    %p75 = scmp.eq.s32.totalorder %s25, 3
    %p76 = scmp.ne.s32.totalorder %s71, %s73
    %p77 = scmp.eq.s32.totalorder %s25, 0
    %p78 = por %p76, %p77
    %p79 = scmp.ne.s32.totalorder %s71, %s73
    %p80 = scmp.eq.s32.totalorder %s30, 3
    %p81 = por %p79, %p80
    %p82 = scmp.ne.s32.totalorder %s73, %s74
    %p83 = scmp.eq.s32.totalorder %s30, 0
    %p84 = por %p82, %p83
    %p85 = scmp.ne.s32.totalorder %s73, %s74
    %p86 = scmp.eq.s32.totalorder %s31, 3
    %p87 = por %p85, %p86
    %p89 = scmp.ne.s32.totalorder %s74, %s88
    %p90 = scmp.eq.s32.totalorder %s31, 0
    %p91 = por %p89, %p90
    %s92 = ssub.s32 %s32, %s44
    %p93 = scmp.eq.s32.totalorder %s92, 0
    %s95 = sadd.s32 %s94, 1
    %s96 = scalar_select %p93, %s94, %s95
    %p99 = pneg %p93
    %p100 = scmp.eq.s32.totalorder %s25, 3
    %p101 = por %p99, %p100
    %p102 = scmp.ne.s32.totalorder %s94, %s97
    %p103 = scmp.eq.s32.totalorder %s25, 0
    %p104 = por %p102, %p103
    %p105 = scmp.ne.s32.totalorder %s94, %s97
    %p106 = scmp.eq.s32.totalorder %s30, 3
    %p107 = por %p105, %p106
    %p108 = scmp.ne.s32.totalorder %s97, %s98
    %p109 = scmp.eq.s32.totalorder %s30, 0
    %p110 = por %p108, %p109
    %p111 = scmp.ne.s32.totalorder %s97, %s98
    %p112 = scmp.eq.s32.totalorder %s31, 3
    %p113 = por %p111, %p112
    %p115 = scmp.ne.s32.totalorder %s98, %s114
    %p116 = scmp.eq.s32.totalorder %s31, 0
    %p117 = por %p115, %p116
    %s118 = ssub.s32 %s33, %s40
    %p119 = scmp.eq.s32.totalorder %s118, 0
    %s121 = sadd.s32 %s120, 1
    %s122 = scalar_select %p119, %s120, %s121
    %p125 = pneg %p119
    %p126 = scmp.eq.s32.totalorder %s25, 3
    %p127 = por %p125, %p126
    %p128 = scmp.ne.s32.totalorder %s120, %s123
    %p129 = scmp.eq.s32.totalorder %s25, 0
    %p130 = por %p128, %p129
    %p131 = scmp.ne.s32.totalorder %s120, %s123
    %p132 = scmp.eq.s32.totalorder %s30, 3
    %p133 = por %p131, %p132
    %p134 = scmp.ne.s32.totalorder %s123, %s124
    %p135 = scmp.eq.s32.totalorder %s30, 0
    %p136 = por %p134, %p135
    %p137 = scmp.ne.s32.totalorder %s123, %s124
    %p138 = scmp.eq.s32.totalorder %s31, 3
    %p139 = por %p137, %p138
    %p141 = scmp.ne.s32.totalorder %s124, %s140
    %p142 = scmp.eq.s32.totalorder %s31, 0
    %p143 = por %p141, %p142
    %s144 = ssub.s32 %s33, %s40
    %p145 = scmp.eq.s32.totalorder %s144, 0
    %s147 = sadd.s32 %s146, 1
    %s148 = scalar_select %p145, %s146, %s147
    %p151 = pneg %p145
    %p152 = scmp.eq.s32.totalorder %s25, 3
    %p153 = por %p151, %p152
    %p154 = scmp.ne.s32.totalorder %s146, %s149
    %p155 = scmp.eq.s32.totalorder %s25, 0
    %p156 = por %p154, %p155
    %p157 = scmp.ne.s32.totalorder %s146, %s149
    %p158 = scmp.eq.s32.totalorder %s30, 3
    %p159 = por %p157, %p158
    %p160 = scmp.ne.s32.totalorder %s149, %s150
    %p161 = scmp.eq.s32.totalorder %s30, 0
    %p162 = por %p160, %p161
    %p163 = scmp.ne.s32.totalorder %s149, %s150
    %p164 = scmp.eq.s32.totalorder %s31, 3
    %p165 = por %p163, %p164
    %p167 = scmp.ne.s32.totalorder %s150, %s166
    %p168 = scmp.eq.s32.totalorder %s31, 0
    %p169 = por %p167, %p168
    %s170 = ssub.s32 %s33, %s40
    %p171 = scmp.eq.s32.totalorder %s170, 0
    %s173 = sadd.s32 %s172, 1
    %s174 = scalar_select %p171, %s172, %s173
    %p177 = pneg %p171
    %p178 = scmp.eq.s32.totalorder %s25, 3
    %p179 = por %p177, %p178
    %p180 = scmp.ne.s32.totalorder %s172, %s175
    %p181 = scmp.eq.s32.totalorder %s25, 0
    %p182 = por %p180, %p181
    %p183 = scmp.ne.s32.totalorder %s172, %s175
    %p184 = scmp.eq.s32.totalorder %s30, 3
    %p185 = por %p183, %p184
    %p186 = scmp.ne.s32.totalorder %s175, %s176
    %p187 = scmp.eq.s32.totalorder %s30, 0
    %p188 = por %p186, %p187
    %p189 = scmp.ne.s32.totalorder %s175, %s176
    %p190 = scmp.eq.s32.totalorder %s31, 3
    %p191 = por %p189, %p190
    %p193 = scmp.ne.s32.totalorder %s176, %s192
    %p194 = scmp.eq.s32.totalorder %s31, 0
    %p195 = por %p193, %p194
    %s196 = ssub.s32 %s33, %s40
    %p197 = scmp.eq.s32.totalorder %s196, 0
    %s199 = sadd.s32 %s198, 1
    %s200 = scalar_select %p197, %s198, %s199
    %p203 = pneg %p197
    %p204 = scmp.eq.s32.totalorder %s25, 3
    %p205 = por %p203, %p204
    %p206 = scmp.ne.s32.totalorder %s198, %s201
    %p207 = scmp.eq.s32.totalorder %s25, 0
    %p208 = por %p206, %p207
    %p209 = scmp.ne.s32.totalorder %s198, %s201
    %p210 = scmp.eq.s32.totalorder %s30, 3
    %p211 = por %p209, %p210
    %p212 = scmp.ne.s32.totalorder %s201, %s202
    %p213 = scmp.eq.s32.totalorder %s30, 0
    %p214 = por %p212, %p213
    %p215 = scmp.ne.s32.totalorder %s201, %s202
    %p216 = scmp.eq.s32.totalorder %s31, 3
    %p217 = por %p215, %p216
    %p219 = scmp.ne.s32.totalorder %s202, %s218
    %p220 = scmp.eq.s32.totalorder %s31, 0
    %p221 = por %p219, %p220
    %s222 = ssub.s32 %s33, %s40
    %p223 = scmp.eq.s32.totalorder %s222, 0
    %s225 = sadd.s32 %s224, 1
    %s226 = scalar_select %p223, %s224, %s225
    %p229 = pneg %p223
    %p230 = scmp.eq.s32.totalorder %s25, 3
    %p231 = por %p229, %p230
    %p232 = scmp.ne.s32.totalorder %s224, %s227
    %p233 = scmp.eq.s32.totalorder %s25, 0
    %p234 = por %p232, %p233
    %p235 = scmp.ne.s32.totalorder %s224, %s227
    %p236 = scmp.eq.s32.totalorder %s30, 3
    %p237 = por %p235, %p236
    %p238 = scmp.ne.s32.totalorder %s227, %s228
    %p239 = scmp.eq.s32.totalorder %s30, 0
    %p240 = por %p238, %p239
    %p241 = scmp.ne.s32.totalorder %s227, %s228
    %p242 = scmp.eq.s32.totalorder %s31, 3
    %p243 = por %p241, %p242
    %p245 = scmp.ne.s32.totalorder %s228, %s244
    %p246 = scmp.eq.s32.totalorder %s31, 0
    %p247 = por %p245, %p246
    %s248 = ssub.s32 %s33, %s40
    %p249 = scmp.eq.s32.totalorder %s248, 0
    %s251 = sadd.s32 %s250, 1
    %s252 = scalar_select %p249, %s250, %s251
    %p255 = pneg %p249
    %p256 = scmp.eq.s32.totalorder %s25, 3
    %p257 = por %p255, %p256
    %p258 = scmp.ne.s32.totalorder %s250, %s253
    %p259 = scmp.eq.s32.totalorder %s25, 0
    %p260 = por %p258, %p259
    %p261 = scmp.ne.s32.totalorder %s250, %s253
    %p262 = scmp.eq.s32.totalorder %s30, 3
    %p263 = por %p261, %p262
    %p264 = scmp.ne.s32.totalorder %s253, %s254
    %p265 = scmp.eq.s32.totalorder %s30, 0
    %p266 = por %p264, %p265
    %p267 = scmp.ne.s32.totalorder %s253, %s254
    %p268 = scmp.eq.s32.totalorder %s31, 3
    %p269 = por %p267, %p268
    %p271 = scmp.ne.s32.totalorder %s254, %s270
    %p272 = scmp.eq.s32.totalorder %s31, 0
    %p273 = por %p271, %p272
    %s274 = ssub.s32 %s33, %s40
    %p275 = scmp.eq.s32.totalorder %s274, 0
    %s277 = sadd.s32 %s276, 1
    %s278 = scalar_select %p275, %s276, %s277
    %p281 = pneg %p275
    %p282 = scmp.eq.s32.totalorder %s25, 3
    %p283 = por %p281, %p282
    %p284 = scmp.ne.s32.totalorder %s276, %s279
    %p285 = scmp.eq.s32.totalorder %s25, 0
    %p286 = por %p284, %p285
    %p287 = scmp.ne.s32.totalorder %s276, %s279
    %p288 = scmp.eq.s32.totalorder %s30, 3
    %p289 = por %p287, %p288
    %p290 = scmp.ne.s32.totalorder %s279, %s280
    %p291 = scmp.eq.s32.totalorder %s30, 0
    %p292 = por %p290, %p291
    %p293 = scmp.ne.s32.totalorder %s279, %s280
    %p294 = scmp.eq.s32.totalorder %s31, 3
    %p295 = por %p293, %p294
    %p297 = scmp.ne.s32.totalorder %s280, %s296
    %p298 = scmp.eq.s32.totalorder %s31, 0
    %p299 = por %p297, %p298
    %s300 = ssub.s32 %s33, %s40
    %p301 = scmp.eq.s32.totalorder %s300, 0
    %s303 = sadd.s32 %s302, 1
    %s304 = scalar_select %p301, %s302, %s303
    %p307 = pneg %p301
    %p308 = scmp.eq.s32.totalorder %s25, 3
    %p309 = por %p307, %p308
    %p310 = scmp.ne.s32.totalorder %s302, %s305
    %p311 = scmp.eq.s32.totalorder %s25, 0
    %p312 = por %p310, %p311
    %p313 = scmp.ne.s32.totalorder %s302, %s305
    %p314 = scmp.eq.s32.totalorder %s30, 3
    %p315 = por %p313, %p314
    %p316 = scmp.ne.s32.totalorder %s305, %s306
    %p317 = scmp.eq.s32.totalorder %s30, 0
    %p318 = por %p316, %p317
    %p319 = scmp.ne.s32.totalorder %s305, %s306
    %p320 = scmp.eq.s32.totalorder %s31, 3
    %p321 = por %p319, %p320
    %p323 = scmp.ne.s32.totalorder %s306, %s322
    %p324 = scmp.eq.s32.totalorder %s31, 0
    %p325 = por %p323, %p324
    %s326 = ssub.s32 %s33, %s40
    %p327 = scmp.eq.s32.totalorder %s326, 0
    %s329 = sadd.s32 %s328, 1
    %s330 = scalar_select %p327, %s328, %s329
    %p333 = pneg %p327
    %p334 = scmp.eq.s32.totalorder %s25, 3
    %p335 = por %p333, %p334
    %p336 = scmp.ne.s32.totalorder %s328, %s331
    %p337 = scmp.eq.s32.totalorder %s25, 0
    %p338 = por %p336, %p337
    %p339 = scmp.ne.s32.totalorder %s328, %s331
    %p340 = scmp.eq.s32.totalorder %s30, 3
    %p341 = por %p339, %p340
    %p342 = scmp.ne.s32.totalorder %s331, %s332
    %p343 = scmp.eq.s32.totalorder %s30, 0
    %p344 = por %p342, %p343
    %p345 = scmp.ne.s32.totalorder %s331, %s332
    %p346 = scmp.eq.s32.totalorder %s31, 3
    %p347 = por %p345, %p346
    %p349 = scmp.ne.s32.totalorder %s332, %s348
    %p350 = scmp.eq.s32.totalorder %s31, 0
    %p351 = por %p349, %p350
    %s352 = ssub.s32 %s33, %s40
    %p353 = scmp.eq.s32.totalorder %s352, 0
    %s355 = sadd.s32 %s354, 1
    %s356 = scalar_select %p353, %s354, %s355
    %p359 = pneg %p353
    %p360 = scmp.eq.s32.totalorder %s25, 3
    %p361 = por %p359, %p360
    %p362 = scmp.ne.s32.totalorder %s354, %s357
    %p363 = scmp.eq.s32.totalorder %s25, 0
    %p364 = por %p362, %p363
    %p365 = scmp.ne.s32.totalorder %s354, %s357
    %p366 = scmp.eq.s32.totalorder %s30, 3
    %p367 = por %p365, %p366
    %p368 = scmp.ne.s32.totalorder %s357, %s358
    %p369 = scmp.eq.s32.totalorder %s30, 0
    %p370 = por %p368, %p369
    %p371 = scmp.ne.s32.totalorder %s357, %s358
    %p372 = scmp.eq.s32.totalorder %s31, 3
    %p373 = por %p371, %p372
    %p375 = scmp.ne.s32.totalorder %s358, %s374
    %p376 = scmp.eq.s32.totalorder %s31, 0
    %p377 = por %p375, %p376
    %s378 = ssub.s32 %s33, %s40
    %p379 = scmp.eq.s32.totalorder %s378, 0
    %s381 = sadd.s32 %s380, 1
    %s382 = scalar_select %p379, %s380, %s381
    %p385 = pneg %p379
    %p386 = scmp.eq.s32.totalorder %s25, 3
    %p387 = por %p385, %p386
    %p388 = scmp.ne.s32.totalorder %s380, %s383
    %p389 = scmp.eq.s32.totalorder %s25, 0
    %p390 = por %p388, %p389
    %p391 = scmp.ne.s32.totalorder %s380, %s383
    %p392 = scmp.eq.s32.totalorder %s30, 3
    %p393 = por %p391, %p392
    %p394 = scmp.ne.s32.totalorder %s383, %s384
    %p395 = scmp.eq.s32.totalorder %s30, 0
    %p396 = por %p394, %p395
    %p397 = scmp.ne.s32.totalorder %s383, %s384
    %p398 = scmp.eq.s32.totalorder %s31, 3
    %p399 = por %p397, %p398
    %p401 = scmp.ne.s32.totalorder %s384, %s400
    %p402 = scmp.eq.s32.totalorder %s31, 0
    %p403 = por %p401, %p402
    %s404 = ssub.s32 %s33, %s40
    %p405 = scmp.eq.s32.totalorder %s404, 0
    %s407 = sadd.s32 %s406, 1
    %s408 = scalar_select %p405, %s406, %s407
    %p411 = pneg %p405
    %p412 = scmp.eq.s32.totalorder %s25, 3
    %p413 = por %p411, %p412
    %p414 = scmp.ne.s32.totalorder %s406, %s409
    %p415 = scmp.eq.s32.totalorder %s25, 0
    %p416 = por %p414, %p415
    %p417 = scmp.ne.s32.totalorder %s406, %s409
    %p418 = scmp.eq.s32.totalorder %s30, 3
    %p419 = por %p417, %p418
    %p420 = scmp.ne.s32.totalorder %s409, %s410
    %p421 = scmp.eq.s32.totalorder %s30, 0
    %p422 = por %p420, %p421
    %p423 = scmp.ne.s32.totalorder %s409, %s410
    %p424 = scmp.eq.s32.totalorder %s31, 3
    %p425 = por %p423, %p424
    %p427 = scmp.ne.s32.totalorder %s410, %s426
    %p428 = scmp.eq.s32.totalorder %s31, 0
    %p429 = por %p427, %p428
    %s431 = sadd.s32 %s430, 1
    %p434 = scmp.eq.s32.totalorder %s25, 3
    %p435 = scmp.ne.s32.totalorder %s430, %s432
    %p436 = scmp.eq.s32.totalorder %s25, 0
    %p437 = por %p435, %p436
    %p438 = scmp.ne.s32.totalorder %s430, %s432
    %p439 = scmp.eq.s32.totalorder %s30, 3
    %p440 = por %p438, %p439
    %p441 = scmp.ne.s32.totalorder %s432, %s433
    %p442 = scmp.eq.s32.totalorder %s30, 0
    %p443 = por %p441, %p442
    %p444 = scmp.ne.s32.totalorder %s432, %s433
    %p445 = scmp.eq.s32.totalorder %s31, 3
    %p446 = por %p444, %p445
    %p448 = scmp.ne.s32.totalorder %s433, %s447
    %p449 = scmp.eq.s32.totalorder %s31, 0
    %p450 = por %p448, %p449
    %s452 = sadd.s32 %s451, 1
    %p455 = scmp.eq.s32.totalorder %s25, 3
    %p456 = scmp.ne.s32.totalorder %s451, %s453
    %p457 = scmp.eq.s32.totalorder %s25, 0
    %p458 = por %p456, %p457
    %p459 = scmp.ne.s32.totalorder %s451, %s453
    %p460 = scmp.eq.s32.totalorder %s30, 3
    %p461 = por %p459, %p460
    %p462 = scmp.ne.s32.totalorder %s453, %s454
    %p463 = scmp.eq.s32.totalorder %s30, 0
    %p464 = por %p462, %p463
    %p465 = scmp.ne.s32.totalorder %s453, %s454
    %p466 = scmp.eq.s32.totalorder %s31, 3
    %p467 = por %p465, %p466
    %p469 = scmp.ne.s32.totalorder %s454, %s468
    %p470 = scmp.eq.s32.totalorder %s31, 0
    %p471 = por %p469, %p470
    %s472 = ssub.s32 %s32, %s44
    %p473 = scmp.eq.s32.totalorder %s472, 0
    %s475 = sadd.s32 %s474, 1
    %s476 = scalar_select %p473, %s474, %s475
    %p479 = pneg %p473
    %p480 = scmp.eq.s32.totalorder %s25, 3
    %p481 = por %p479, %p480
    %p482 = scmp.ne.s32.totalorder %s474, %s477
    %p483 = scmp.eq.s32.totalorder %s25, 0
    %p484 = por %p482, %p483
    %p485 = scmp.ne.s32.totalorder %s474, %s477
    %p486 = scmp.eq.s32.totalorder %s30, 3
    %p487 = por %p485, %p486
    %p488 = scmp.ne.s32.totalorder %s477, %s478
    %p489 = scmp.eq.s32.totalorder %s30, 0
    %p490 = por %p488, %p489
    %p491 = scmp.ne.s32.totalorder %s477, %s478
    %p492 = scmp.eq.s32.totalorder %s31, 3
    %p493 = por %p491, %p492
    %p495 = scmp.ne.s32.totalorder %s478, %s494
    %p496 = scmp.eq.s32.totalorder %s31, 0
    %p497 = por %p495, %p496
    %s498 = ssub.s32 %s32, %s44
    %p499 = scmp.eq.s32.totalorder %s498, 0
    %s501 = sadd.s32 %s500, 1
    %s502 = scalar_select %p499, %s500, %s501
    %p505 = pneg %p499
    %p506 = scmp.eq.s32.totalorder %s25, 3
    %p507 = por %p505, %p506
    %p508 = scmp.ne.s32.totalorder %s500, %s503
    %p509 = scmp.eq.s32.totalorder %s25, 0
    %p510 = por %p508, %p509
    %p511 = scmp.ne.s32.totalorder %s500, %s503
    %p512 = scmp.eq.s32.totalorder %s30, 3
    %p513 = por %p511, %p512
    %p514 = scmp.ne.s32.totalorder %s503, %s504
    %p515 = scmp.eq.s32.totalorder %s30, 0
    %p516 = por %p514, %p515
    %p517 = scmp.ne.s32.totalorder %s503, %s504
    %p518 = scmp.eq.s32.totalorder %s31, 3
    %p519 = por %p517, %p518
    %p521 = scmp.ne.s32.totalorder %s504, %s520
    %p522 = scmp.eq.s32.totalorder %s31, 0
    %p523 = por %p521, %p522
    %p524 = scmp.le.s32.totalorder 1, %s25
    %p525 = scmp.lt.s32.totalorder %s25, 5
    %p526 = pnand %p524, %p525
    %p527 = pneg %p526
    // Predicated region
    $region9: #{sep_transformer_forward.1} parent=5 // pred_check
      _
    $region10: #{sep_transformer_forward.1} parent=5 // pred_check_branch
      %529 = sbr.rel (%p526) target = $region12
    $region11: #{sep_transformer_forward.1} parent=5 // pred_region
      %s530 = ssub.s32 %s25, 1
      // Predicated region
      $region13: #{sep_transformer_forward.1} parent=11 // pred_check
        %p531 = pneg %p84
      $region14: #{sep_transformer_forward.1} parent=11 // pred_check_branch
        %533 = sbr.rel (%p531) target = $region16
      $region15: #{sep_transformer_forward.1} parent=11 // pred_region
        _
      $region16: #{sep_transformer_forward.1} parent=11 // pred_fallthru
        _
      // Predicated region
      $region17: #{sep_transformer_forward.1} parent=11 // pred_check
        %p534 = pneg %p443
      $region18: #{sep_transformer_forward.1} parent=11 // pred_check_branch
        %536 = sbr.rel (%p534) target = $region20
      $region19: #{sep_transformer_forward.1} parent=11 // pred_region
        _
      $region20: #{sep_transformer_forward.1} parent=11 // pred_fallthru
        _
      // Predicated region
      $region21: #{sep_transformer_forward.1} parent=11 // pred_check
        %p537 = pneg %p464
      $region22: #{sep_transformer_forward.1} parent=11 // pred_check_branch
        %539 = sbr.rel (%p537) target = $region24
      $region23: #{sep_transformer_forward.1} parent=11 // pred_region
        _
      $region24: #{sep_transformer_forward.1} parent=11 // pred_fallthru
        _
    $region12: #{sep_transformer_forward.1} parent=5 // pred_fallthru
      _
    %p540 = scmp.lt.s32.totalorder %s25, 4
    // Predicated region
    $region25: #{sep_transformer_forward.1} parent=5 // pred_check
      %p541 = pneg %p540
    $region26: #{sep_transformer_forward.1} parent=5 // pred_check_branch
      %543 = sbr.rel (%p541) target = $region28
    $region27: #{sep_transformer_forward.1} parent=5 // pred_region
      // Predicated region
      $region29: #{sep_transformer_forward.1} parent=27 // pred_check
        %p544 = pneg %p57
      $region30: #{sep_transformer_forward.1} parent=27 // pred_check_branch
        %546 = sbr.rel (%p544) target = $region32
      $region31: #{sep_transformer_forward.1} parent=27 // pred_region
        %p547 = scmp.lt.s32.totalorder %s32, 1
        %s548 = scalar_select %p547, %s32, 1
        %s549 = smul.addr %s548, 4
        %s550 = scalar_lea.vmem %s0, %s549
      $region32: #{sep_transformer_forward.1} parent=27 // pred_fallthru
        _
      // Predicated region
      $region33: #{sep_transformer_forward.1} parent=27 // pred_check
        %p551 = pneg %p104
      $region34: #{sep_transformer_forward.1} parent=27 // pred_check_branch
        %553 = sbr.rel (%p551) target = $region36
      $region35: #{sep_transformer_forward.1} parent=27 // pred_region
        %p554 = scmp.lt.s32.totalorder %s32, 1
        %s555 = scalar_select %p554, %s32, 1
        %s556 = scalar_lea.vmem %s2, %s555
      $region36: #{sep_transformer_forward.1} parent=27 // pred_fallthru
        _
      // Predicated region
      $region37: #{sep_transformer_forward.1} parent=27 // pred_check
        %p557 = pneg %p130
      $region38: #{sep_transformer_forward.1} parent=27 // pred_check_branch
        %559 = sbr.rel (%p557) target = $region40
      $region39: #{sep_transformer_forward.1} parent=27 // pred_region
        %p560 = scmp.lt.s32.totalorder %s33, 1
        %s561 = scalar_select %p560, %s33, 1
        %s562 = smul.addr %s561, 4
        %s563 = smul.addr %s562, 4
        %s564 = scalar_lea.vmem %s3, %s563
      $region40: #{sep_transformer_forward.1} parent=27 // pred_fallthru
        _
      // Predicated region
      $region41: #{sep_transformer_forward.1} parent=27 // pred_check
        %p565 = pneg %p156
      $region42: #{sep_transformer_forward.1} parent=27 // pred_check_branch
        %567 = sbr.rel (%p565) target = $region44
      $region43: #{sep_transformer_forward.1} parent=27 // pred_region
        %p568 = scmp.lt.s32.totalorder %s33, 1
        %s569 = scalar_select %p568, %s33, 1
        %s570 = scalar_lea.vmem %s4, %s569
      $region44: #{sep_transformer_forward.1} parent=27 // pred_fallthru
        _
      // Predicated region
      $region45: #{sep_transformer_forward.1} parent=27 // pred_check
        %p571 = pneg %p182
      $region46: #{sep_transformer_forward.1} parent=27 // pred_check_branch
        %573 = sbr.rel (%p571) target = $region48
      $region47: #{sep_transformer_forward.1} parent=27 // pred_region
        %p574 = scmp.lt.s32.totalorder %s33, 1
        %s575 = scalar_select %p574, %s33, 1
        %s576 = smul.addr %s575, 4
        %s577 = smul.addr %s576, 4
        %s578 = scalar_lea.vmem %s5, %s577
      $region48: #{sep_transformer_forward.1} parent=27 // pred_fallthru
        _
      // Predicated region
      $region49: #{sep_transformer_forward.1} parent=27 // pred_check
        %p579 = pneg %p208
      $region50: #{sep_transformer_forward.1} parent=27 // pred_check_branch
        %581 = sbr.rel (%p579) target = $region52
      $region51: #{sep_transformer_forward.1} parent=27 // pred_region
        %p582 = scmp.lt.s32.totalorder %s33, 1
        %s583 = scalar_select %p582, %s33, 1
        %s584 = scalar_lea.vmem %s6, %s583
      $region52: #{sep_transformer_forward.1} parent=27 // pred_fallthru
        _
      // Predicated region
      $region53: #{sep_transformer_forward.1} parent=27 // pred_check
        %p585 = pneg %p234
      $region54: #{sep_transformer_forward.1} parent=27 // pred_check_branch
        %587 = sbr.rel (%p585) target = $region56
      $region55: #{sep_transformer_forward.1} parent=27 // pred_region
        %p588 = scmp.lt.s32.totalorder %s33, 1
        %s589 = scalar_select %p588, %s33, 1
        %s590 = smul.addr %s589, 4
        %s591 = smul.addr %s590, 4
        %s592 = scalar_lea.vmem %s7, %s591
      $region56: #{sep_transformer_forward.1} parent=27 // pred_fallthru
        _
      // Predicated region
      $region57: #{sep_transformer_forward.1} parent=27 // pred_check
        %p593 = pneg %p260
      $region58: #{sep_transformer_forward.1} parent=27 // pred_check_branch
        %595 = sbr.rel (%p593) target = $region60
      $region59: #{sep_transformer_forward.1} parent=27 // pred_region
        %p596 = scmp.lt.s32.totalorder %s33, 1
        %s597 = scalar_select %p596, %s33, 1
        %s598 = scalar_lea.vmem %s8, %s597
      $region60: #{sep_transformer_forward.1} parent=27 // pred_fallthru
        _
      // Predicated region
      $region61: #{sep_transformer_forward.1} parent=27 // pred_check
        %p599 = pneg %p286
      $region62: #{sep_transformer_forward.1} parent=27 // pred_check_branch
        %601 = sbr.rel (%p599) target = $region64
      $region63: #{sep_transformer_forward.1} parent=27 // pred_region
        %p602 = scmp.lt.s32.totalorder %s33, 1
        %s603 = scalar_select %p602, %s33, 1
        %s604 = smul.addr %s603, 8
        %s605 = smul.addr %s604, 4
        %s606 = scalar_lea.vmem %s9, %s605
      $region64: #{sep_transformer_forward.1} parent=27 // pred_fallthru
        _
      // Predicated region
      $region65: #{sep_transformer_forward.1} parent=27 // pred_check
        %p607 = pneg %p312
      $region66: #{sep_transformer_forward.1} parent=27 // pred_check_branch
        %609 = sbr.rel (%p607) target = $region68
      $region67: #{sep_transformer_forward.1} parent=27 // pred_region
        %p610 = scmp.lt.s32.totalorder %s33, 1
        %s611 = scalar_select %p610, %s33, 1
        %s612 = scalar_lea.vmem %s10, %s611
      $region68: #{sep_transformer_forward.1} parent=27 // pred_fallthru
        _
      // Predicated region
      $region69: #{sep_transformer_forward.1} parent=27 // pred_check
        %p613 = pneg %p338
      $region70: #{sep_transformer_forward.1} parent=27 // pred_check_branch
        %615 = sbr.rel (%p613) target = $region72
      $region71: #{sep_transformer_forward.1} parent=27 // pred_region
        %p616 = scmp.lt.s32.totalorder %s33, 1
        %s617 = scalar_select %p616, %s33, 1
        %s618 = scalar_lea.vmem %s11, %s617
      $region72: #{sep_transformer_forward.1} parent=27 // pred_fallthru
        _
      // Predicated region
      $region73: #{sep_transformer_forward.1} parent=27 // pred_check
        %p619 = pneg %p364
      $region74: #{sep_transformer_forward.1} parent=27 // pred_check_branch
        %621 = sbr.rel (%p619) target = $region76
      $region75: #{sep_transformer_forward.1} parent=27 // pred_region
        %p622 = scmp.lt.s32.totalorder %s33, 1
        %s623 = scalar_select %p622, %s33, 1
        %s624 = scalar_lea.vmem %s12, %s623
      $region76: #{sep_transformer_forward.1} parent=27 // pred_fallthru
        _
      // Predicated region
      $region77: #{sep_transformer_forward.1} parent=27 // pred_check
        %p625 = pneg %p390
      $region78: #{sep_transformer_forward.1} parent=27 // pred_check_branch
        %627 = sbr.rel (%p625) target = $region80
      $region79: #{sep_transformer_forward.1} parent=27 // pred_region
        %p628 = scmp.lt.s32.totalorder %s33, 1
        %s629 = scalar_select %p628, %s33, 1
        %s630 = scalar_lea.vmem %s13, %s629
      $region80: #{sep_transformer_forward.1} parent=27 // pred_fallthru
        _
      // Predicated region
      $region81: #{sep_transformer_forward.1} parent=27 // pred_check
        %p631 = pneg %p416
      $region82: #{sep_transformer_forward.1} parent=27 // pred_check_branch
        %633 = sbr.rel (%p631) target = $region84
      $region83: #{sep_transformer_forward.1} parent=27 // pred_region
        %p634 = scmp.lt.s32.totalorder %s33, 1
        %s635 = scalar_select %p634, %s33, 1
        %s636 = scalar_lea.vmem %s14, %s635
      $region84: #{sep_transformer_forward.1} parent=27 // pred_fallthru
        _
    $region28: #{sep_transformer_forward.1} parent=5 // pred_fallthru
      _
    %p637 = scmp.le.s32.totalorder 1, %s25
    %p638 = scmp.lt.s32.totalorder %s25, 5
    %p639 = pnand %p637, %p638
    %p640 = pneg %p639
    // Predicated region
    $region85: #{sep_transformer_forward.1} parent=5 // pred_check
      _
    $region86: #{sep_transformer_forward.1} parent=5 // pred_check_branch
      %642 = sbr.rel (%p639) target = $region88
    $region87: #{sep_transformer_forward.1} parent=5 // pred_region
      %s643 = ssub.s32 %s25, 1
      %p644 = scmp.lt.s32.totalorder %s34, 1
      %s645 = scalar_select %p644, %s34, 1
      %s646 = smul.addr %s645, 4
      %s647 = scalar_lea.vmem %s0, %s646
      %p648 = pneg %p63
      %p649 = pneg %p60
      %p650 = pneg %p84
      %p651 = pneg %p81
      %p652 = scmp.lt.s32.totalorder %s34, 1
      %s653 = scalar_select %p652, %s34, 1
      %s654 = scalar_lea.vmem %s2, %s653
      %p655 = pneg %p110
      %p656 = pneg %p107
      %p657 = scmp.lt.s32.totalorder %s35, 1
      %s658 = scalar_select %p657, %s35, 1
      %s659 = smul.addr %s658, 4
      %s660 = smul.addr %s659, 4
      %s661 = scalar_lea.vmem %s3, %s660
      %p662 = pneg %p136
      %p663 = pneg %p133
      %p664 = scmp.lt.s32.totalorder %s35, 1
      %s665 = scalar_select %p664, %s35, 1
      %s666 = scalar_lea.vmem %s4, %s665
      %p667 = pneg %p162
      %p668 = pneg %p159
      %p669 = scmp.lt.s32.totalorder %s35, 1
      %s670 = scalar_select %p669, %s35, 1
      %s671 = smul.addr %s670, 4
      %s672 = smul.addr %s671, 4
      %s673 = scalar_lea.vmem %s5, %s672
      %p674 = pneg %p188
      %p675 = pneg %p185
      %p676 = scmp.lt.s32.totalorder %s35, 1
      %s677 = scalar_select %p676, %s35, 1
      %s678 = scalar_lea.vmem %s6, %s677
      %p679 = pneg %p214
      %p680 = pneg %p211
      %p681 = scmp.lt.s32.totalorder %s35, 1
      %s682 = scalar_select %p681, %s35, 1
      %s683 = smul.addr %s682, 4
      %s684 = smul.addr %s683, 4
      %s685 = scalar_lea.vmem %s7, %s684
      %p686 = pneg %p240
      %p687 = pneg %p237
      %p688 = scmp.lt.s32.totalorder %s35, 1
      %s689 = scalar_select %p688, %s35, 1
      %s690 = scalar_lea.vmem %s8, %s689
      %p691 = pneg %p266
      %p692 = pneg %p263
      %p693 = scmp.lt.s32.totalorder %s35, 1
      %s694 = scalar_select %p693, %s35, 1
      %s695 = smul.addr %s694, 8
      %s696 = smul.addr %s695, 4
      %s697 = scalar_lea.vmem %s9, %s696
      %p698 = pneg %p292
      %p699 = pneg %p289
      %p700 = scmp.lt.s32.totalorder %s35, 1
      %s701 = scalar_select %p700, %s35, 1
      %s702 = scalar_lea.vmem %s10, %s701
      %p703 = pneg %p318
      %p704 = pneg %p315
      %p705 = scmp.lt.s32.totalorder %s35, 1
      %s706 = scalar_select %p705, %s35, 1
      %s707 = scalar_lea.vmem %s11, %s706
      %p708 = pneg %p344
      %p709 = pneg %p341
      %p710 = scmp.lt.s32.totalorder %s35, 1
      %s711 = scalar_select %p710, %s35, 1
      %s712 = scalar_lea.vmem %s12, %s711
      %p713 = pneg %p370
      %p714 = pneg %p367
      %p715 = scmp.lt.s32.totalorder %s35, 1
      %s716 = scalar_select %p715, %s35, 1
      %s717 = scalar_lea.vmem %s13, %s716
      %p718 = pneg %p396
      %p719 = pneg %p393
      %p720 = scmp.lt.s32.totalorder %s35, 1
      %s721 = scalar_select %p720, %s35, 1
      %s722 = scalar_lea.vmem %s14, %s721
      %p723 = pneg %p422
      %p724 = pneg %p419
      %p725 = pneg %p443
      %p726 = pneg %p440
      %p727 = pneg %p464
      %p728 = pneg %p461
      %p729 = pneg %p490
      %p730 = pneg %p487
      %p731 = scmp.lt.s32.totalorder %s34, 1
      %s732 = scalar_select %p731, %s34, 1
      %s733 = smul.addr %s732, 4
      %s734 = scalar_lea.vmem %s17, %s733
      %p735 = pneg %p516
      %p736 = pneg %p513
      %p737 = scmp.lt.s32.totalorder %s34, 1
      %s738 = scalar_select %p737, %s34, 1
      %s739 = smul.addr %s738, 8
      %s740 = scalar_lea.vmem %s18, %s739
      %p741 = scmp.lt.s32.totalorder %s34, 1
      %s742 = scalar_select %p741, %s34, 1
      %s743 = smul.addr %s742, 4
      %s744 = scalar_lea.vmem %s0, %s743
      %p745 = scmp.lt.s32.totalorder %s34, 1
      %s746 = scalar_select %p745, %s34, 1
      %s747 = scalar_lea.vmem %s2, %s746
      %p748 = scmp.lt.s32.totalorder %s35, 1
      %s749 = scalar_select %p748, %s35, 1
      %s750 = smul.addr %s749, 4
      %s751 = smul.addr %s750, 4
      %s752 = scalar_lea.vmem %s3, %s751
      %p753 = scmp.lt.s32.totalorder %s35, 1
      %s754 = scalar_select %p753, %s35, 1
      %s755 = scalar_lea.vmem %s4, %s754
      %p756 = scmp.lt.s32.totalorder %s35, 1
      %s757 = scalar_select %p756, %s35, 1
      %s758 = smul.addr %s757, 4
      %s759 = smul.addr %s758, 4
      %s760 = scalar_lea.vmem %s5, %s759
      %p761 = scmp.lt.s32.totalorder %s35, 1
      %s762 = scalar_select %p761, %s35, 1
      %s763 = scalar_lea.vmem %s6, %s762
      %p764 = scmp.lt.s32.totalorder %s35, 1
      %s765 = scalar_select %p764, %s35, 1
      %s766 = smul.addr %s765, 4
      %s767 = smul.addr %s766, 4
      %s768 = scalar_lea.vmem %s7, %s767
      %p769 = scmp.lt.s32.totalorder %s35, 1
      %s770 = scalar_select %p769, %s35, 1
      %s771 = scalar_lea.vmem %s8, %s770
      %p772 = scmp.lt.s32.totalorder %s35, 1
      %s773 = scalar_select %p772, %s35, 1
      %s774 = smul.addr %s773, 8
      %s775 = smul.addr %s774, 4
      %s776 = scalar_lea.vmem %s9, %s775
      %p777 = scmp.lt.s32.totalorder %s35, 1
      %s778 = scalar_select %p777, %s35, 1
      %s779 = scalar_lea.vmem %s10, %s778
      %p780 = scmp.lt.s32.totalorder %s35, 1
      %s781 = scalar_select %p780, %s35, 1
      %s782 = scalar_lea.vmem %s11, %s781
      %p783 = scmp.lt.s32.totalorder %s35, 1
      %s784 = scalar_select %p783, %s35, 1
      %s785 = scalar_lea.vmem %s12, %s784
      %p786 = scmp.lt.s32.totalorder %s35, 1
      %s787 = scalar_select %p786, %s35, 1
      %s788 = scalar_lea.vmem %s13, %s787
      %p789 = scmp.lt.s32.totalorder %s35, 1
      %s790 = scalar_select %p789, %s35, 1
      %s791 = scalar_lea.vmem %s14, %s790
      %p792 = scmp.lt.s32.totalorder %s34, 1
      %s793 = scalar_select %p792, %s34, 1
      %s794 = smul.addr %s793, 4
      %s795 = scalar_lea.vmem %s17, %s794
      %p796 = scmp.lt.s32.totalorder %s34, 1
      %s797 = scalar_select %p796, %s34, 1
      %s798 = smul.addr %s797, 8
      %s799 = scalar_lea.vmem %s18, %s798
      %p801 = scmp.eq.s32.totalorder %s35, 0
      // Predicated region
      $region89: #{sep_transformer_forward.1} parent=87 // pred_check
        %p802 = pneg %p801
      $region90: #{sep_transformer_forward.1} parent=87 // pred_check_branch
        %804 = sbr.rel (%p802) target = $region92
      $region91: #{sep_transformer_forward.1} parent=87 // pred_region
        %v805 = vld [vmem:[%s744] sm:$0xf]
        %vm806 = vcmask 257024
        %807 = vst.msk [vmem:[%s795] sm:$0xf] %vm806, %v805
      $region92: #{sep_transformer_forward.1} parent=87 // pred_fallthru
        _
      %v808 = vld [vmem:[%s795] sm:$0xf]
      %v809 = vunpack.c.l.bf16 %v808
      %v810 = vld [vmem:[%s752] sm:$0xf]
      %v811 = vld [vmem:[%s752 + $0x4] sm:$0xf]
      %v812 = vld [vmem:[%s752 + $0x8] sm:$0xf]
      %v813 = vld [vmem:[%s752 + $0xc] sm:$0xf]
      %v814 = vld [vmem:[%s755] sm:$0x1]
      %v816 = vperm.slane %v814, 0
      %v822 = vunpack.c.l.b16 %v810
      %v823 = vunpack.c.l.b16 %v811
      %v824 = vunpack.c.l.b16 %v812
      %v825 = vunpack.c.l.b16 %v813
      %v826 = vpack.c.b16 %v823, %v822
      %v827 = vpack.c.b16 %v825, %v824
      %vm830 = vcmask 261120
      %v832 = vsel %vm830, %v808, 0
      %834 = vmatpush.bf16.msra.mxu0 0
      %835 = vmatpush.bf16.msra.mxu0 0
      %836 = vmatpush.bf16.msra.mxu0 0
      %837 = vmatpush.bf16.msra.mxu0 0
      %838 = vmatpush.bf16.msra.mxu0 0
      %839 = vmatpush.bf16.msra.mxu0 0
      %840 = vmatpush.bf16.msra.mxu0 %v827
      %841 = vmatpush.bf16.msra.mxu0 %v826
      %842 = vmatmul.bf16.gmra.mxu0 %v832
      %v843 = vpop.f32.mrf.mxu0
      %v844 = vadd.f32 %v816, %v843
      %v845 = vpop.f32.mrf.mxu0
      %846 = vdwg.mxu0
      %v847 = vld [vmem:[%s1] sm:$0xff]
      %v848 = vld [vmem:[%s747] sm:$0x1]
      %vm849 = vcmp.gt.f32.partialorder %v848, 0.5
      %v850 = vsel %vm849, -1e+09, 0.0
      %v852 = vperm.slane %v850, 0
      %v854 = vadd.f32 %v847, %v852
      %v855 = vld [vmem:[%s760] sm:$0xf]
      %v856 = vld [vmem:[%s760 + $0x4] sm:$0xf]
      %v857 = vld [vmem:[%s760 + $0x8] sm:$0xf]
      %v858 = vld [vmem:[%s760 + $0xc] sm:$0xf]
      %860 = vrot.lane.b32.xlu0 %v844, 96
      %v861 = vpop.permute.xlu0 %860
      %vm862 = vcmask 64512
      %v863 = vsel %vm862, %v844, 0
      %v865 = vsel %vm862, %v861, 0
      %867 = vmatpush.xpose.msra.mxu0 0.0
      %868 = vmatpush.xpose.msra.mxu0 0.0
      %869 = vmatpush.xpose.msra.mxu0 0.0
      %870 = vmatpush.xpose.msra.mxu0 0.0
      %871 = vmatpush.xpose.msra.mxu0 0.0
      %872 = vmatpush.xpose.msra.mxu0 0.0
      %873 = vmatpush.xpose.msra.mxu0 0.0
      %874 = vmatpush.xpose.msra.mxu0 0.0
      %875 = vmatpush.xpose.msra.mxu0 0.0
      %876 = vmatpush.xpose.msra.mxu0 0.0
      %877 = vmatpush.xpose.msra.mxu0 0.0
      %878 = vmatpush.xpose.msra.mxu0 0.0
      %879 = vmatpush.xpose.msra.mxu0 0.0
      %880 = vmatpush.xpose.msra.mxu0 0.0
      %881 = vmatpush.xpose.msra.mxu0 0.0
      %882 = vmatpush.xpose.msra.mxu0 %v865
      %883 = vmatmul.f32.gmra.mxu0 %v863
      %v884 = vpop.f32.mrf.mxu0
      %v885 = vadd.f32 %v854, %v884
      %886 = vdwg.mxu0
      %v887 = vsel %vm862, %v885, -inf
      %888 = vmax.xlane.f32.xlu0 %v887
      %v889 = vpop.xlane.xlu0 %888
      %v890 = vsub.f32 %v885, %v889
      %v891 = vmul.f32 %v890, 1.442695
      %v892 = vpow.pop %v891
      %v893 = vsel %vm862, %v892, 0.0
      %894 = vadd.xlane.f32.xlu0 %v893
      %v895 = vpop.xlane.xlu0 %894
      %v896 = vrcp.pop %v895
      %v897 = vmul.f32 %v892, %v896
      %898 = vrot.lane.b32.xlu0 %v844, 64
      %v899 = vpop.permute.xlu0 %898
      %v902 = vsel %vm862, %v897, 0
      %904 = vmatpush.msra.mxu0 0.0
      %905 = vmatpush.msra.mxu0 0.0
      %906 = vmatpush.msra.mxu0 0.0
      %907 = vmatpush.msra.mxu0 0.0
      %908 = vmatpush.msra.mxu0 0.0
      %909 = vmatpush.msra.mxu0 0.0
      %910 = vmatpush.msra.mxu0 0.0
      %911 = vmatpush.msra.mxu0 0.0
      %912 = vmatpush.msra.mxu0 0.0
      %913 = vmatpush.msra.mxu0 0.0
      %914 = vmatpush.msra.mxu0 0.0
      %915 = vmatpush.msra.mxu0 0.0
      %916 = vmatpush.msra.mxu0 0.0
      %917 = vmatpush.msra.mxu0 0.0
      %918 = vmatpush.msra.mxu0 0.0
      %919 = vmatpush.msra.mxu0 %v899
      %920 = vmatmul.f32.gmra.mxu0 %v902
      %v921 = vpop.f32.mrf.mxu0
      %v922 = vadd.f32 0.0, %v921
      %923 = vdwg.mxu0
      %v924 = vpack.c.bf16 %v922, %v922
      %925 = vrot.lane.b32.xlu0 %v844, 120
      %v926 = vpop.permute.xlu0 %925
      %927 = vrot.lane.b32.xlu0 %v844, 88
      %v928 = vpop.permute.xlu0 %927
      %v929 = vsel %vm862, %v926, 0
      %v931 = vsel %vm862, %v928, 0
      %933 = vmatpush.xpose.msra.mxu0 0.0
      %934 = vmatpush.xpose.msra.mxu0 0.0
      %935 = vmatpush.xpose.msra.mxu0 0.0
      %936 = vmatpush.xpose.msra.mxu0 0.0
      %937 = vmatpush.xpose.msra.mxu0 0.0
      %938 = vmatpush.xpose.msra.mxu0 0.0
      %939 = vmatpush.xpose.msra.mxu0 0.0
      %940 = vmatpush.xpose.msra.mxu0 0.0
      %941 = vmatpush.xpose.msra.mxu0 0.0
      %942 = vmatpush.xpose.msra.mxu0 0.0
      %943 = vmatpush.xpose.msra.mxu0 0.0
      %944 = vmatpush.xpose.msra.mxu0 0.0
      %945 = vmatpush.xpose.msra.mxu0 0.0
      %946 = vmatpush.xpose.msra.mxu0 0.0
      %947 = vmatpush.xpose.msra.mxu0 0.0
      %948 = vmatpush.xpose.msra.mxu0 %v931
      %949 = vmatmul.f32.gmra.mxu0 %v929
      %v950 = vpop.f32.mrf.mxu0
      %v951 = vadd.f32 %v854, %v950
      %952 = vdwg.mxu0
      %v953 = vsel %vm862, %v951, -inf
      %954 = vmax.xlane.f32.xlu0 %v953
      %v955 = vpop.xlane.xlu0 %954
      %v956 = vsub.f32 %v951, %v955
      %v957 = vmul.f32 %v956, 1.442695
      %v958 = vpow.pop %v957
      %v959 = vsel %vm862, %v958, 0.0
      %960 = vadd.xlane.f32.xlu0 %v959
      %v961 = vpop.xlane.xlu0 %960
      %v962 = vrcp.pop %v961
      %v963 = vmul.f32 %v958, %v962
      %964 = vrot.lane.b32.xlu0 %v844, 56
      %v965 = vpop.permute.xlu0 %964
      %v968 = vsel %vm862, %v963, 0
      %970 = vmatpush.msra.mxu0 0.0
      %971 = vmatpush.msra.mxu0 0.0
      %972 = vmatpush.msra.mxu0 0.0
      %973 = vmatpush.msra.mxu0 0.0
      %974 = vmatpush.msra.mxu0 0.0
      %975 = vmatpush.msra.mxu0 0.0
      %976 = vmatpush.msra.mxu0 0.0
      %977 = vmatpush.msra.mxu0 0.0
      %978 = vmatpush.msra.mxu0 0.0
      %979 = vmatpush.msra.mxu0 0.0
      %980 = vmatpush.msra.mxu0 0.0
      %981 = vmatpush.msra.mxu0 0.0
      %982 = vmatpush.msra.mxu0 0.0
      %983 = vmatpush.msra.mxu0 0.0
      %984 = vmatpush.msra.mxu0 0.0
      %985 = vmatpush.msra.mxu0 %v965
      %986 = vmatmul.f32.gmra.mxu0 %v968
      %v987 = vpop.f32.mrf.mxu0
      %v988 = vadd.f32 0.0, %v987
      %989 = vdwg.mxu0
      %v990 = vpack.c.bf16 %v988, %v988
      %v992 = vsel %vm862, %v990, 0
      %vm994 = vcmask 1043456
      %v996 = vsel %vm994, %v856, 0
      %998 = vmatpush.bf16.msra.mxu0 0
      %999 = vmatpush.bf16.msra.mxu0 0
      %1000 = vmatpush.bf16.msra.mxu0 0
      %1001 = vmatpush.bf16.msra.mxu0 0
      %1002 = vmatpush.bf16.msra.mxu0 0
      %1003 = vmatpush.bf16.msra.mxu0 0
      %1004 = vmatpush.bf16.msra.mxu0 0
      %1005 = vmatpush.bf16.msra.mxu0 %v996
      %1006 = vmatmul.bf16.gmra.mxu0 %v992
      %v1007 = vpop.f32.mrf.mxu0
      %v1008 = vadd.f32 0.0, %v1007
      %v1009 = vpop.f32.mrf.mxu0
      %1010 = vdwg.mxu0
      %v1012 = vsel %vm862, %v924, 0
      %v1015 = vsel %vm994, %v855, 0
      %1017 = vmatpush.bf16.msra.mxu0 0
      %1018 = vmatpush.bf16.msra.mxu0 0
      %1019 = vmatpush.bf16.msra.mxu0 0
      %1020 = vmatpush.bf16.msra.mxu0 0
      %1021 = vmatpush.bf16.msra.mxu0 0
      %1022 = vmatpush.bf16.msra.mxu0 0
      %1023 = vmatpush.bf16.msra.mxu0 0
      %1024 = vmatpush.bf16.msra.mxu0 %v1015
      %1025 = vmatmul.bf16.gmra.mxu0 %v1012
      %v1026 = vpop.f32.mrf.mxu0
      %v1027 = vadd.f32 %v1008, %v1026
      %v1028 = vpop.f32.mrf.mxu0
      %1029 = vdwg.mxu0
      %1030 = vrot.lane.b32.xlu0 %v844, 112
      %v1031 = vpop.permute.xlu0 %1030
      %1032 = vrot.lane.b32.xlu0 %v844, 80
      %v1033 = vpop.permute.xlu0 %1032
      %v1034 = vsel %vm862, %v1031, 0
      %v1036 = vsel %vm862, %v1033, 0
      %1038 = vmatpush.xpose.msra.mxu0 0.0
      %1039 = vmatpush.xpose.msra.mxu0 0.0
      %1040 = vmatpush.xpose.msra.mxu0 0.0
      %1041 = vmatpush.xpose.msra.mxu0 0.0
      %1042 = vmatpush.xpose.msra.mxu0 0.0
      %1043 = vmatpush.xpose.msra.mxu0 0.0
      %1044 = vmatpush.xpose.msra.mxu0 0.0
      %1045 = vmatpush.xpose.msra.mxu0 0.0
      %1046 = vmatpush.xpose.msra.mxu0 0.0
      %1047 = vmatpush.xpose.msra.mxu0 0.0
      %1048 = vmatpush.xpose.msra.mxu0 0.0
      %1049 = vmatpush.xpose.msra.mxu0 0.0
      %1050 = vmatpush.xpose.msra.mxu0 0.0
      %1051 = vmatpush.xpose.msra.mxu0 0.0
      %1052 = vmatpush.xpose.msra.mxu0 0.0
      %1053 = vmatpush.xpose.msra.mxu0 %v1036
      %1054 = vmatmul.f32.gmra.mxu0 %v1034
      %v1055 = vpop.f32.mrf.mxu0
      %v1056 = vadd.f32 %v854, %v1055
      %1057 = vdwg.mxu0
      %v1058 = vsel %vm862, %v1056, -inf
      %1059 = vmax.xlane.f32.xlu0 %v1058
      %v1060 = vpop.xlane.xlu0 %1059
      %v1061 = vsub.f32 %v1056, %v1060
      %v1062 = vmul.f32 %v1061, 1.442695
      %v1063 = vpow.pop %v1062
      %v1064 = vsel %vm862, %v1063, 0.0
      %1065 = vadd.xlane.f32.xlu0 %v1064
      %v1066 = vpop.xlane.xlu0 %1065
      %v1067 = vrcp.pop %v1066
      %v1068 = vmul.f32 %v1063, %v1067
      %1069 = vrot.lane.b32.xlu0 %v844, 48
      %v1070 = vpop.permute.xlu0 %1069
      %v1073 = vsel %vm862, %v1068, 0
      %1075 = vmatpush.msra.mxu0 0.0
      %1076 = vmatpush.msra.mxu0 0.0
      %1077 = vmatpush.msra.mxu0 0.0
      %1078 = vmatpush.msra.mxu0 0.0
      %1079 = vmatpush.msra.mxu0 0.0
      %1080 = vmatpush.msra.mxu0 0.0
      %1081 = vmatpush.msra.mxu0 0.0
      %1082 = vmatpush.msra.mxu0 0.0
      %1083 = vmatpush.msra.mxu0 0.0
      %1084 = vmatpush.msra.mxu0 0.0
      %1085 = vmatpush.msra.mxu0 0.0
      %1086 = vmatpush.msra.mxu0 0.0
      %1087 = vmatpush.msra.mxu0 0.0
      %1088 = vmatpush.msra.mxu0 0.0
      %1089 = vmatpush.msra.mxu0 0.0
      %1090 = vmatpush.msra.mxu0 %v1070
      %1091 = vmatmul.f32.gmra.mxu0 %v1073
      %v1092 = vpop.f32.mrf.mxu0
      %v1093 = vadd.f32 0.0, %v1092
      %1094 = vdwg.mxu0
      %v1095 = vpack.c.bf16 %v1093, %v1093
      %v1097 = vsel %vm862, %v1095, 0
      %v1100 = vsel %vm994, %v857, 0
      %1102 = vmatpush.bf16.msra.mxu0 0
      %1103 = vmatpush.bf16.msra.mxu0 0
      %1104 = vmatpush.bf16.msra.mxu0 0
      %1105 = vmatpush.bf16.msra.mxu0 0
      %1106 = vmatpush.bf16.msra.mxu0 0
      %1107 = vmatpush.bf16.msra.mxu0 0
      %1108 = vmatpush.bf16.msra.mxu0 0
      %1109 = vmatpush.bf16.msra.mxu0 %v1100
      %1110 = vmatmul.bf16.gmra.mxu0 %v1097
      %v1111 = vpop.f32.mrf.mxu0
      %v1112 = vadd.f32 0.0, %v1111
      %v1113 = vpop.f32.mrf.mxu0
      %1114 = vdwg.mxu0
      %v1115 = vadd.f32 %v1027, %v1112
      %1116 = vrot.lane.b32.xlu0 %v844, 104
      %v1117 = vpop.permute.xlu0 %1116
      %1118 = vrot.lane.b32.xlu0 %v844, 72
      %v1119 = vpop.permute.xlu0 %1118
      %v1120 = vsel %vm862, %v1117, 0
      %v1122 = vsel %vm862, %v1119, 0
      %1124 = vmatpush.xpose.msra.mxu0 0.0
      %1125 = vmatpush.xpose.msra.mxu0 0.0
      %1126 = vmatpush.xpose.msra.mxu0 0.0
      %1127 = vmatpush.xpose.msra.mxu0 0.0
      %1128 = vmatpush.xpose.msra.mxu0 0.0
      %1129 = vmatpush.xpose.msra.mxu0 0.0
      %1130 = vmatpush.xpose.msra.mxu0 0.0
      %1131 = vmatpush.xpose.msra.mxu0 0.0
      %1132 = vmatpush.xpose.msra.mxu0 0.0
      %1133 = vmatpush.xpose.msra.mxu0 0.0
      %1134 = vmatpush.xpose.msra.mxu0 0.0
      %1135 = vmatpush.xpose.msra.mxu0 0.0
      %1136 = vmatpush.xpose.msra.mxu0 0.0
      %1137 = vmatpush.xpose.msra.mxu0 0.0
      %1138 = vmatpush.xpose.msra.mxu0 0.0
      %1139 = vmatpush.xpose.msra.mxu0 %v1122
      %1140 = vmatmul.f32.gmra.mxu0 %v1120
      %v1141 = vpop.f32.mrf.mxu0
      %v1142 = vadd.f32 %v854, %v1141
      %1143 = vdwg.mxu0
      %v1144 = vsel %vm862, %v1142, -inf
      %1145 = vmax.xlane.f32.xlu0 %v1144
      %v1146 = vpop.xlane.xlu0 %1145
      %v1147 = vsub.f32 %v1142, %v1146
      %v1148 = vmul.f32 %v1147, 1.442695
      %v1149 = vpow.pop %v1148
      %v1150 = vsel %vm862, %v1149, 0.0
      %1151 = vadd.xlane.f32.xlu0 %v1150
      %v1152 = vpop.xlane.xlu0 %1151
      %v1153 = vrcp.pop %v1152
      %v1154 = vmul.f32 %v1149, %v1153
      %1155 = vrot.lane.b32.xlu0 %v844, 40
      %v1156 = vpop.permute.xlu0 %1155
      %v1159 = vsel %vm862, %v1154, 0
      %1161 = vmatpush.msra.mxu0 0.0
      %1162 = vmatpush.msra.mxu0 0.0
      %1163 = vmatpush.msra.mxu0 0.0
      %1164 = vmatpush.msra.mxu0 0.0
      %1165 = vmatpush.msra.mxu0 0.0
      %1166 = vmatpush.msra.mxu0 0.0
      %1167 = vmatpush.msra.mxu0 0.0
      %1168 = vmatpush.msra.mxu0 0.0
      %1169 = vmatpush.msra.mxu0 0.0
      %1170 = vmatpush.msra.mxu0 0.0
      %1171 = vmatpush.msra.mxu0 0.0
      %1172 = vmatpush.msra.mxu0 0.0
      %1173 = vmatpush.msra.mxu0 0.0
      %1174 = vmatpush.msra.mxu0 0.0
      %1175 = vmatpush.msra.mxu0 0.0
      %1176 = vmatpush.msra.mxu0 %v1156
      %1177 = vmatmul.f32.gmra.mxu0 %v1159
      %v1178 = vpop.f32.mrf.mxu0
      %v1179 = vadd.f32 0.0, %v1178
      %1180 = vdwg.mxu0
      %v1181 = vpack.c.bf16 %v1179, %v1179
      %v1183 = vsel %vm862, %v1181, 0
      %v1186 = vsel %vm994, %v858, 0
      %1188 = vmatpush.bf16.msra.mxu0 0
      %1189 = vmatpush.bf16.msra.mxu0 0
      %1190 = vmatpush.bf16.msra.mxu0 0
      %1191 = vmatpush.bf16.msra.mxu0 0
      %1192 = vmatpush.bf16.msra.mxu0 0
      %1193 = vmatpush.bf16.msra.mxu0 0
      %1194 = vmatpush.bf16.msra.mxu0 0
      %1195 = vmatpush.bf16.msra.mxu0 %v1186
      %1196 = vmatmul.bf16.gmra.mxu0 %v1183
      %v1197 = vpop.f32.mrf.mxu0
      %v1198 = vadd.f32 0.0, %v1197
      %v1199 = vpop.f32.mrf.mxu0
      %1200 = vdwg.mxu0
      %v1201 = vadd.f32 %v1115, %v1198
      %v1202 = vld [vmem:[%s763] sm:$0x1]
      %v1204 = vperm.slane %v1202, 0
      %v1206 = vadd.f32 %v1201, %v1204
      %v1207 = vadd.f32 %v809, %v1206
      %v1208 = vld [vmem:[%s782] sm:$0x1]
      %v1209 = vld [vmem:[%s785] sm:$0x1]
      %v1210 = vsel %vm830, %v1207, 0.0
      %1211 = vadd.xlane.f32.xlu0 %v1210
      %v1212 = vpop.xlane.xlu0 %1211
      %v1213 = vrcp.pop 32.0
      %v1214 = vmul.f32 32.0, %v1213
      %v1215 = vsub.f32 1.0, %v1214
      %v1216 = vmul.f32 %v1213, %v1215
      %v1217 = vadd.f32 %v1213, %v1216
      %vm1218 = vweird.f32 %v1213
      %v1219 = vsel %vm1218, %v1213, %v1217
      %v1220 = vmul.f32 %v1212, %v1219
      %v1221 = vsub.f32 %v1207, %v1220
      %v1222 = vmul.f32 %v1221, %v1221
      %v1223 = vsel %vm830, %v1222, 0.0
      %1224 = vadd.xlane.f32.xlu0 %v1223
      %v1225 = vpop.xlane.xlu0 %1224
      %v1226 = vmul.f32 %v1225, %v1219
      %v1227 = vadd.f32 %v1226, 1e-05
      %v1228 = vrsqrt.pop %v1227
      %v1229 = vmul.f32 %v1228, %v1227
      %v1230 = vmul.f32 %v1229, %v1228
      %v1231 = vmul.f32 0.5, %v1230
      %v1232 = vsub.f32 1.5, %v1231
      %v1233 = vmul.f32 %v1228, %v1232
      %vm1234 = vweird.f32 %v1227
      %vm1235 = vweird.f32 %v1228
      %vm1236 = vmor %vm1234, %vm1235
      %v1237 = vsel %vm1236, %v1228, %v1233
      %v1238 = vmul.f32 %v1221, %v1237
      %v1240 = vperm.slane %v1208, 0
      %v1242 = vmul.f32 %v1238, %v1240
      %v1244 = vperm.slane %v1209, 0
      %v1246 = vadd.f32 %v1242, %v1244
      %v1247 = vpack.c.bf16 %v1246, %v1246
      %v1248 = vld [vmem:[%s768] sm:$0xf]
      %v1249 = vld [vmem:[%s768 + $0x4] sm:$0xf]
      %v1250 = vld [vmem:[%s768 + $0x8] sm:$0xf]
      %v1251 = vld [vmem:[%s768 + $0xc] sm:$0xf]
      %v1252 = vld [vmem:[%s771] sm:$0x1]
      %v1254 = vperm.slane %v1252, 0
      %v1260 = vunpack.c.l.b16 %v1248
      %v1261 = vunpack.c.l.b16 %v1249
      %v1262 = vunpack.c.l.b16 %v1250
      %v1263 = vunpack.c.l.b16 %v1251
      %v1264 = vpack.c.b16 %v1261, %v1260
      %v1265 = vpack.c.b16 %v1263, %v1262
      %v1269 = vsel %vm830, %v1247, 0
      %1271 = vmatpush.bf16.msra.mxu0 0
      %1272 = vmatpush.bf16.msra.mxu0 0
      %1273 = vmatpush.bf16.msra.mxu0 0
      %1274 = vmatpush.bf16.msra.mxu0 0
      %1275 = vmatpush.bf16.msra.mxu0 0
      %1276 = vmatpush.bf16.msra.mxu0 0
      %1277 = vmatpush.bf16.msra.mxu0 %v1265
      %1278 = vmatpush.bf16.msra.mxu0 %v1264
      %1279 = vmatmul.bf16.gmra.mxu0 %v1269
      %v1280 = vpop.f32.mrf.mxu0
      %v1281 = vadd.f32 %v1254, %v1280
      %v1282 = vpop.f32.mrf.mxu0
      %1283 = vdwg.mxu0
      %v1284 = vmax.f32 %v1281, 0.0
      %v1285 = vpack.c.bf16 %v1284, %v1284
      %v1286 = vld [vmem:[%s776] sm:$0xf]
      %v1287 = vld [vmem:[%s776 + $0x4] sm:$0xf]
      %v1288 = vld [vmem:[%s776 + $0x8] sm:$0xf]
      %v1289 = vld [vmem:[%s776 + $0xc] sm:$0xf]
      %v1290 = vld [vmem:[%s776 + $0x10] sm:$0xf]
      %v1291 = vld [vmem:[%s776 + $0x14] sm:$0xf]
      %v1292 = vld [vmem:[%s776 + $0x18] sm:$0xf]
      %v1293 = vld [vmem:[%s776 + $0x1c] sm:$0xf]
      %v1294 = vld [vmem:[%s779] sm:$0x1]
      %v1296 = vperm.slane %v1294, 0
      %v1306 = vunpack.c.l.b16 %v1286
      %v1307 = vunpack.c.l.b16 %v1287
      %v1308 = vunpack.c.l.b16 %v1288
      %v1309 = vunpack.c.l.b16 %v1289
      %v1310 = vunpack.c.l.b16 %v1290
      %v1311 = vunpack.c.l.b16 %v1291
      %v1312 = vunpack.c.l.b16 %v1292
      %v1313 = vunpack.c.l.b16 %v1293
      %v1314 = vpack.c.b16 %v1307, %v1306
      %v1315 = vpack.c.b16 %v1309, %v1308
      %v1316 = vpack.c.b16 %v1311, %v1310
      %v1317 = vpack.c.b16 %v1313, %v1312
      %vm1322 = vcmask 523264
      %v1324 = vsel %vm1322, %v1285, 0
      %1326 = vmatpush.bf16.msra.mxu0 0
      %1327 = vmatpush.bf16.msra.mxu0 0
      %1328 = vmatpush.bf16.msra.mxu0 0
      %1329 = vmatpush.bf16.msra.mxu0 0
      %1330 = vmatpush.bf16.msra.mxu0 %v1317
      %1331 = vmatpush.bf16.msra.mxu0 %v1316
      %1332 = vmatpush.bf16.msra.mxu0 %v1315
      %1333 = vmatpush.bf16.msra.mxu0 %v1314
      %1334 = vmatmul.bf16.gmra.mxu0 %v1324
      %v1335 = vpop.f32.mrf.mxu0
      %v1336 = vadd.f32 %v1296, %v1335
      %v1337 = vpop.f32.mrf.mxu0
      %1338 = vdwg.mxu0
      %v1339 = vadd.f32 %v1246, %v1336
      %v1340 = vld [vmem:[%s788] sm:$0x1]
      %v1341 = vld [vmem:[%s791] sm:$0x1]
      %v1342 = vsel %vm830, %v1339, 0.0
      %1343 = vadd.xlane.f32.xlu0 %v1342
      %v1344 = vpop.xlane.xlu0 %1343
      %v1345 = vmul.f32 %v1344, %v1219
      %v1346 = vsub.f32 %v1339, %v1345
      %v1347 = vmul.f32 %v1346, %v1346
      %v1348 = vsel %vm830, %v1347, 0.0
      %1349 = vadd.xlane.f32.xlu0 %v1348
      %v1350 = vpop.xlane.xlu0 %1349
      %v1351 = vmul.f32 %v1350, %v1219
      %v1352 = vadd.f32 %v1351, 1e-05
      %v1353 = vrsqrt.pop %v1352
      %v1354 = vmul.f32 %v1353, %v1352
      %v1355 = vmul.f32 %v1354, %v1353
      %v1356 = vmul.f32 0.5, %v1355
      %v1357 = vsub.f32 1.5, %v1356
      %v1358 = vmul.f32 %v1353, %v1357
      %vm1359 = vweird.f32 %v1352
      %vm1360 = vweird.f32 %v1353
      %vm1361 = vmor %vm1359, %vm1360
      %v1362 = vsel %vm1361, %v1353, %v1358
      %v1363 = vmul.f32 %v1346, %v1362
      %v1365 = vperm.slane %v1340, 0
      %v1367 = vmul.f32 %v1363, %v1365
      %v1369 = vperm.slane %v1341, 0
      %v1371 = vadd.f32 %v1367, %v1369
      %v1372 = vpack.c.bf16 %v1371, %v1371
      %vm1373 = vcmask 257024
      %1374 = vst.msk [vmem:[%s795] sm:$0xf] %vm1373, %v1372
      %p1375 = scmp.eq.s32.totalorder %s35, 1
      // Predicated region
      $region93: #{sep_transformer_forward.1} parent=87 // pred_check
        %p1376 = pneg %p1375
      $region94: #{sep_transformer_forward.1} parent=87 // pred_check_branch
        %1378 = sbr.rel (%p1376) target = $region96
      $region95: #{sep_transformer_forward.1} parent=87 // pred_region
        %v1379 = vld [vmem:[%s15] sm:$0xf]
        %v1380 = vld [vmem:[%s15 + $0x4] sm:$0xf]
        %v1381 = vld [vmem:[%s15 + $0x8] sm:$0xf]
        %v1382 = vld [vmem:[%s15 + $0xc] sm:$0xf]
        %v1383 = vld [vmem:[%s16] sm:$0x1]
        %v1385 = vperm.slane %v1383, 0
        %v1391 = vunpack.c.l.b16 %v1379
        %v1392 = vunpack.c.l.b16 %v1380
        %v1393 = vunpack.c.l.b16 %v1381
        %v1394 = vunpack.c.l.b16 %v1382
        %v1395 = vpack.c.b16 %v1392, %v1391
        %v1396 = vpack.c.b16 %v1394, %v1393
        %v1400 = vsel %vm830, %v1372, 0
        %1402 = vmatpush.bf16.msra.mxu0 0
        %1403 = vmatpush.bf16.msra.mxu0 0
        %1404 = vmatpush.bf16.msra.mxu0 0
        %1405 = vmatpush.bf16.msra.mxu0 0
        %1406 = vmatpush.bf16.msra.mxu0 0
        %1407 = vmatpush.bf16.msra.mxu0 0
        %1408 = vmatpush.bf16.msra.mxu0 %v1396
        %1409 = vmatpush.bf16.msra.mxu0 %v1395
        %1410 = vmatmul.bf16.gmra.mxu0 %v1400
        %v1411 = vpop.f32.mrf.mxu0
        %v1412 = vadd.f32 %v1385, %v1411
        %v1413 = vpop.f32.mrf.mxu0
        %1414 = vdwg.mxu0
        %1415 = vst [vmem:[%s799] sm:$0xff] %v1412
      $region96: #{sep_transformer_forward.1} parent=87 // pred_fallthru
        _
      %p1416 = scmp.lt.s32.totalorder %s34, 1
      %s1417 = scalar_select %p1416, %s34, 1
      %s1418 = smul.addr %s1417, 4
      %s1419 = scalar_lea.vmem %s17, %s1418
      %p1420 = scmp.lt.s32.totalorder %s34, 1
      %s1421 = scalar_select %p1420, %s34, 1
      %s1422 = smul.addr %s1421, 8
      %s1423 = scalar_lea.vmem %s18, %s1422
      // Predicated region
      $region97: #{sep_transformer_forward.1} parent=87 // pred_check
        %p1424 = pneg %p487
      $region98: #{sep_transformer_forward.1} parent=87 // pred_check_branch
        %1426 = sbr.rel (%p1424) target = $region100
      $region99: #{sep_transformer_forward.1} parent=87 // pred_region
        _
      $region100: #{sep_transformer_forward.1} parent=87 // pred_fallthru
        _
      // Predicated region
      $region101: #{sep_transformer_forward.1} parent=87 // pred_check
        %p1427 = pneg %p513
      $region102: #{sep_transformer_forward.1} parent=87 // pred_check_branch
        %1429 = sbr.rel (%p1427) target = $region104
      $region103: #{sep_transformer_forward.1} parent=87 // pred_region
        _
      $region104: #{sep_transformer_forward.1} parent=87 // pred_fallthru
        _
    $region88: #{sep_transformer_forward.1} parent=5 // pred_fallthru
      _
    %p1430 = scmp.le.s32.totalorder 2, %s25
    // Predicated region
    $region105: #{sep_transformer_forward.1} parent=5 // pred_check
      %p1431 = pneg %p1430
    $region106: #{sep_transformer_forward.1} parent=5 // pred_check_branch
      %1433 = sbr.rel (%p1431) target = $region108
    $region107: #{sep_transformer_forward.1} parent=5 // pred_region
      %s1434 = ssub.s32 %s25, 2
      // Predicated region
      $region109: #{sep_transformer_forward.1} parent=107 // pred_check
        %p1435 = pneg %p493
      $region110: #{sep_transformer_forward.1} parent=107 // pred_check_branch
        %1437 = sbr.rel (%p1435) target = $region112
      $region111: #{sep_transformer_forward.1} parent=107 // pred_region
        %p1438 = scmp.lt.s32.totalorder %s36, 1
        %s1439 = scalar_select %p1438, %s36, 1
        %s1440 = smul.addr %s1439, 4
        %s1441 = scalar_lea.vmem %s17, %s1440
      $region112: #{sep_transformer_forward.1} parent=107 // pred_fallthru
        _
      // Predicated region
      $region113: #{sep_transformer_forward.1} parent=107 // pred_check
        %p1442 = pneg %p519
      $region114: #{sep_transformer_forward.1} parent=107 // pred_check_branch
        %1444 = sbr.rel (%p1442) target = $region116
      $region115: #{sep_transformer_forward.1} parent=107 // pred_region
        %p1445 = scmp.lt.s32.totalorder %s36, 1
        %s1446 = scalar_select %p1445, %s36, 1
        %s1447 = smul.addr %s1446, 8
        %s1448 = scalar_lea.vmem %s18, %s1447
      $region116: #{sep_transformer_forward.1} parent=107 // pred_fallthru
        _
    $region108: #{sep_transformer_forward.1} parent=5 // pred_fallthru
      _
  $region6: #{sep_transformer_forward.1} parent=0 // loop_footer
    %s29 = sadd.s32 1, %s25
  $region7: #{sep_transformer_forward.1} parent=0 // loop_footer_branch
    %24 = sbr.rel target = $region3
  $region8: #{sep_transformer_forward.1} parent=0 // loop_exit
    _

</llo_original>
